<compile_context>
chip_gen: v6e
topology: v6e:2x2x1
jax: 0.10.0
libtpu: 0.0.40
codegen_flags: <defaults>
</compile_context>

<pallas_src>
from typing import NamedTuple, List

import numpy as np
import jax
import jax.numpy as jnp
from jax import lax
from jax.experimental import pallas as pl
from jax.experimental.pallas import tpu as pltpu

# ----------------------------- configuration (small, module-consistent) ------
NUM_CLASS = 10
BATCH = 2
CHANNELS = 4
SPATIAL = 16
NUM_PARAMS = 4          # transformation-parameter vector length (t1, t2)
NUM_BANDS = 6
MAX_FREQ = 10.0
DIM = 32                # rep_size of the backbone / `dim` argument (kept small)
MLP_DIM = 64            # `mlp_dim` argument (kept small)
EMBED_DIM = 32          # model.vit.embed_dim stand-in (CLS query dimension)
FOURIER_DIM = NUM_PARAMS * 2 * NUM_BANDS          # 48
TEMPERATURE = 0.07      # TODO(synk): InfoNCE class not provided; standard temperature used
BN_EPS = 1e-5


def _round_up(x, m):
    return ((x + m - 1) // m) * m


# ----------------------------- in-kernel helpers ------------------------------
def _mxu_dot(a, b):
    """bf16 MXU operands (cast in-kernel), f32 accumulate."""
    return jnp.dot(a.astype(jnp.bfloat16), b.astype(jnp.bfloat16),
                   preferred_element_type=jnp.float32)


def _batchnorm(y, eps=BN_EPS):
    """BatchNorm1d training mode: batch mean, biased variance, identity affine."""
    mean = jnp.mean(y, axis=0, keepdims=True)
    var = jnp.mean(jnp.square(y - mean), axis=0, keepdims=True)
    return (y - mean) * lax.rsqrt(var + eps)


def _l2_normalize(v, eps=1e-12):
    """Matches F.normalize: x / max(||x||, eps)."""
    norm = jnp.sqrt(jnp.sum(v * v, axis=-1, keepdims=True))
    return v / jnp.maximum(norm, eps)


def _infonce(q, k, temperature):
    """Standard InfoNCE (labels = arange(N)): returns (logits (N,N), loss (1,1))."""
    qn = _l2_normalize(q)
    kn = _l2_normalize(k)
    logits = lax.dot_general(
        qn.astype(jnp.bfloat16), kn.astype(jnp.bfloat16),
        (((1,), (1,)), ((), ())),
        preferred_element_type=jnp.float32) * (1.0 / temperature)
    n = logits.shape[0]
    m = jnp.max(logits, axis=-1, keepdims=True)
    lse = m + jnp.log(jnp.sum(jnp.exp(logits - m), axis=-1, keepdims=True))
    row = lax.broadcasted_iota(jnp.int32, (n, n), 0)
    col = lax.broadcasted_iota(jnp.int32, (n, n), 1)
    pos = jnp.sum(jnp.where(row == col, logits, 0.0), axis=-1, keepdims=True)
    loss = jnp.sum(lse - pos, axis=0, keepdims=True) * (1.0 / n)     # (1, 1)
    return logits, loss


# ----------------------------- fused forward kernel (use_fourier=True) --------
def _fused_view_kernel(tt_ref, x_ref, w1_ref, w2_ref, w3_ref,
                       wimg_ref, wpred_ref, out_ref, fea_ref):
    b, nparams = tt_ref.shape
    dim = wimg_ref.shape[1]

    # ---- Fourier feature mapping (BaseKQConModel.fourier_encoder_fn) --------
    # freq_bands = linspace(1, max_freq, num_bands); per parameter p the output
    # columns are [sin(x_p*f_0..f_5*2pi), cos(x_p*f_0..f_5*2pi)].
    # sin/cos written to DISJOINT lane slices: no select, single EUP pass each.
    band = lax.broadcasted_iota(jnp.int32, (1, NUM_BANDS), 1).astype(jnp.float32)
    freq_2pi = (1.0 + band * ((MAX_FREQ - 1.0) / (NUM_BANDS - 1))) * (2.0 * np.pi)
    for p in range(nparams):
        ang = tt_ref[:, p:p + 1] * freq_2pi                     # (B, NUM_BANDS)
        base = p * 2 * NUM_BANDS
        fea_ref[:, base:base + NUM_BANDS] = jnp.sin(ang)
        fea_ref[:, base + NUM_BANDS:base + 2 * NUM_BANDS] = jnp.cos(ang)
    fea = fea_ref[...]

    # ---- projector MLP: (Linear->BN->ReLU) x2 -> Linear -> BN(affine=False) -
    # BN training-mode statistics are computed per view (per grid point),
    # matching two separate projector() calls in the reference module.
    h = jnp.maximum(_batchnorm(_mxu_dot(fea, w1_ref[...])), 0.0)
    h = jnp.maximum(_batchnorm(_mxu_dot(h, w2_ref[...])), 0.0)
    clsq = _batchnorm(_mxu_dot(h, w3_ref[...]))

    # ---- backbone stand-in ---------------------------------------------------
    # TODO(synk): external ViT backbone `self.model(x, CLSq)` not provided;
    # linear stand-in: image_rep = flatten(x) @ w_img, predicted_rep = CLSq @ w_pred.
    image_rep = _mxu_dot(x_ref[...], wimg_ref[...])             # (B, DIM)
    predicted_rep = _mxu_dot(clsq, wpred_ref[...])              # (B, DIM)

    # ---- InfoNCE epilogue (fused: normalize + q@k^T/T + softmax CE) ----------
    logits, loss = _infonce(image_rep, predicted_rep, TEMPERATURE)

    # ---- lane-dense packed output slab (single 128-wide writeback) -----------
    loss_col = 2 * dim + b
    out_ref[...] = jnp.zeros_like(out_ref)
    out_ref[:, 0:dim] = image_rep
    out_ref[:, dim:2 * dim] = predicted_rep
    out_ref[:, 2 * dim:2 * dim + b] = logits
    out_ref[:, loss_col:loss_col + 1] = jnp.broadcast_to(loss, (b, 1))


def fused_forward_fourier(params, x_all, tt):
    """x_all: (2, B, C*H*W) f32, tt: (2, B, NUM_PARAMS) f32 (signed t_diff per view)."""
    w1, w2, w3 = params["projector"]
    wimg = params["backbone"]["w_img"]
    wpred = params["backbone"]["w_pred"]
    nviews, b, chw = x_all.shape
    nparams = tt.shape[2]
    dim = wimg.shape[1]
    pack_w = _round_up(2 * dim + b + 1, 128)        # lane-dense output width
    fourier_dim = nparams * 2 * NUM_BANDS

    return pl.pallas_call(
        _fused_view_kernel,
        out_shape=jax.ShapeDtypeStruct((nviews, b, pack_w), jnp.float32),
        grid=(nviews,),
        in_specs=[
            pl.BlockSpec((None, b, nparams), lambda v: (v, 0, 0)),   # signed t_diff
            pl.BlockSpec((None, b, chw), lambda v: (v, 0, 0)),       # flattened image
            pl.BlockSpec(w1.shape, lambda v: (0, 0)),                # projector L1
            pl.BlockSpec(w2.shape, lambda v: (0, 0)),                # projector L2
            pl.BlockSpec(w3.shape, lambda v: (0, 0)),                # projector L3
            # TODO(synk): when the linear backbone stand-in becomes a real ViT,
            # tile this weight's K dim with an extra "arbitrary" grid axis +
            # VMEM accumulator so blocks fit v7x's smaller (64 MiB) VMEM.
            pl.BlockSpec(wimg.shape, lambda v: (0, 0)),              # backbone w_img
            pl.BlockSpec(wpred.shape, lambda v: (0, 0)),             # backbone w_pred
        ],
        out_specs=pl.BlockSpec((None, b, pack_w), lambda v: (v, 0, 0)),
        scratch_shapes=[pltpu.VMEM((b, fourier_dim), jnp.float32)],
        compiler_params=pltpu.CompilerParams(
            # one independent view per grid point -> shards across both
            # TensorCores on v7x; harmless on single-TC v5e/v6e.
            dimension_semantics=("parallel",)),
    )(tt, x_all, w1, w2, w3, wimg, wpred)


# ----------------------------- fused forward kernel (use_fourier=False) -------
def _nofourier_kernel(x_ref, wimg_ref, out_ref):
    b = x_ref.shape[1]
    dim = wimg_ref.shape[1]
    rep1 = _mxu_dot(x_ref[0], wimg_ref[...])                    # (B, DIM)
    rep2 = _mxu_dot(x_ref[1], wimg_ref[...])                    # (B, DIM)
    logits, loss = _infonce(rep1, rep2, TEMPERATURE)
    loss_col = dim + b
    out_ref[...] = jnp.zeros_like(out_ref)
    out_ref[0:b, 0:dim] = rep1
    out_ref[b:2 * b, 0:dim] = rep2
    out_ref[0:b, dim:dim + b] = logits
    out_ref[:, loss_col:loss_col + 1] = jnp.broadcast_to(loss, (2 * b, 1))


def fused_forward_nofourier(params, x_all):
    wimg = params["backbone"]["w_img"]
    nviews, b, chw = x_all.shape
    dim = wimg.shape[1]
    pack_w = _round_up(dim + b + 1, 128)
    return pl.pallas_call(
        _nofourier_kernel,
        out_shape=jax.ShapeDtypeStruct((nviews * b, pack_w), jnp.float32),
        grid=(1,),
        in_specs=[pl.BlockSpec((nviews, b, chw), lambda i: (0, 0, 0)),
                  pl.BlockSpec(wimg.shape, lambda i: (0, 0))],
        out_specs=pl.BlockSpec((nviews * b, pack_w), lambda i: (0, 0)),
    )(x_all, wimg)


# ----------------------------- parameter construction (deterministic) --------
def init_mlp_params(key, num_layers, input_dim, mlp_dim, output_dim) -> List[jnp.ndarray]:
    params = []
    for l in range(num_layers):
        d1 = input_dim if l == 0 else mlp_dim
        d2 = output_dim if l == num_layers - 1 else mlp_dim
        key, sub = jax.random.split(key)
        params.append(jax.random.normal(sub, (d1, d2), jnp.float32) / np.sqrt(d1))
    return params


def init_params(key):
    k_proj, k_pred, k_cls, k_img, k_q = jax.random.split(key, 5)
    return {
        # TODO(synk): `self.projector` is referenced in _forward but never built in
        # KQConModel; constructed here analogously to _build_mlp(3, FOURIER_DIM, mlp_dim, embed_dim).
        "projector": init_mlp_params(k_proj, 3, FOURIER_DIM, MLP_DIM, EMBED_DIM),
        # built by _build_projector_and_predictor_mlps but unused in forward:
        "predictor": init_mlp_params(k_pred, 3, DIM, MLP_DIM, EMBED_DIM),
        "linear_classifier": init_mlp_params(k_cls, 3, DIM, MLP_DIM, NUM_CLASS),
        # TODO(synk): external ViT backbone `model` not provided; linear stand-in.
        "backbone": {
            "w_img": jax.random.normal(k_img, (CHANNELS * SPATIAL * SPATIAL, DIM),
                                       jnp.float32) / np.sqrt(CHANNELS * SPATIAL * SPATIAL),
            "w_pred": jax.random.normal(k_q, (EMBED_DIM, DIM), jnp.float32) / np.sqrt(EMBED_DIM),
        },
    }


# ----------------------------- forward (mirrors BaseKQConModel._forward) -----
class ForwardOutput(NamedTuple):
    loss: jnp.ndarray
    image_rep1: jnp.ndarray
    predicted_rep2: jnp.ndarray
    image_rep2: jnp.ndarray
    predicted_rep1: jnp.ndarray
    logits: jnp.ndarray
    labels: jnp.ndarray


def kqcon_forward(params, x1, x2, t1, t2, use_fourier=True):
    b = x1.shape[0]
    dim = params["backbone"]["w_img"].shape[1]
    x_all = jnp.stack([x1.reshape(b, -1), x2.reshape(b, -1)], axis=0).astype(jnp.float32)
    t_diff = (t2 - t1).astype(jnp.float32)

    if use_fourier:
        # grid point 0: image_rep1 + predicted_rep1 (= pred(projector(fourier(-t_diff)))), loss1
        # grid point 1: image_rep2 + predicted_rep2 (= pred(projector(fourier(+t_diff)))), loss2
        tt = jnp.stack([-t_diff, t_diff], axis=0)
        packed = fused_forward_fourier(params, x_all, tt)
        loss_col = 2 * dim + b
        image_rep1 = packed[0, :, 0:dim]
        predicted_rep1 = packed[0, :, dim:2 * dim]
        image_rep2 = packed[1, :, 0:dim]
        predicted_rep2 = packed[1, :, dim:2 * dim]
        logits = jnp.concatenate([packed[0, :, 2 * dim:loss_col],
                                  packed[1, :, 2 * dim:loss_col]], axis=0)
        labels = jnp.concatenate([jnp.arange(b, dtype=jnp.int32)] * 2, axis=0)
        loss = packed[0, 0, loss_col] + packed[1, 0, loss_col]
    else:
        packed = fused_forward_nofourier(params, x_all)
        loss_col = dim + b
        image_rep1 = packed[0:b, 0:dim]
        image_rep2 = packed[b:2 * b, 0:dim]
        # TODO(synk): with CLSq=None the backbone stand-in projects a zero query,
        # so the (loss-unused) predicted reps are zeros.
        predicted_rep1 = jnp.zeros((b, dim), jnp.float32)
        predicted_rep2 = jnp.zeros((b, dim), jnp.float32)
        logits = packed[0:b, dim:loss_col]
        labels = jnp.arange(b, dtype=jnp.int32)
        loss = packed[0, loss_col]

    return ForwardOutput(loss, image_rep1, predicted_rep2,
                         image_rep2, predicted_rep1, logits, labels)


# ----------------------------- main -------------------------------------------
if __name__ == "__main__":
    key = jax.random.PRNGKey(0)
    kp, kx1, kx2, kt1, kt2 = jax.random.split(key, 5)
    params = init_params(kp)

    x1 = jax.random.normal(kx1, (BATCH, CHANNELS, SPATIAL, SPATIAL), jnp.float32)
    x2 = jax.random.normal(kx2, (BATCH, CHANNELS, SPATIAL, SPATIAL), jnp.float32)
    t1 = jax.random.normal(kt1, (BATCH, NUM_PARAMS), jnp.float32)
    t2 = jax.random.normal(kt2, (BATCH, NUM_PARAMS), jnp.float32)

    fwd = jax.jit(kqcon_forward, static_argnames=("use_fourier",))
    out = fwd(params, x1, x2, t1, t2, use_fourier=True)
    jax.block_until_ready(out)
    print("KERNEL_OK")
</pallas_src>

<mosaic_0001>
module attributes {stable_mosaic.version = 11 : i64} {
  func.func @_fused_view_kernel(%arg0: i32, %arg1: memref<1x2x4xf32, #tpu.memory_space<vmem>>, %arg2: memref<1x2x1024xf32, #tpu.memory_space<vmem>>, %arg3: memref<48x64xf32, #tpu.memory_space<vmem>>, %arg4: memref<64x64xf32, #tpu.memory_space<vmem>>, %arg5: memref<64x32xf32, #tpu.memory_space<vmem>>, %arg6: memref<1024x32xf32, #tpu.memory_space<vmem>>, %arg7: memref<32x32xf32, #tpu.memory_space<vmem>>, %arg8: memref<1x2x128xf32, #tpu.memory_space<vmem>>, %arg9: memref<2x48xf32, #tpu.memory_space<vmem>>) attributes {dimension_semantics = [#tpu.dimension_semantics<parallel>], iteration_bounds = array<i64: 2>, scalar_prefetch = 0 : i64, scratch_operands = 1 : i64, tpu.core_type = #tpu.core_type<tc>, window_params = [{transform_indices = @transform_0, window_bounds = array<i64: 1, 2, 4>}, {transform_indices = @transform_1, window_bounds = array<i64: 1, 2, 1024>}, {pipeline_mode = #tpu.pipeline_mode<synchronous>, transform_indices = @transform_2, window_bounds = array<i64: 48, 64>}, {pipeline_mode = #tpu.pipeline_mode<synchronous>, transform_indices = @transform_3, window_bounds = array<i64: 64, 64>}, {pipeline_mode = #tpu.pipeline_mode<synchronous>, transform_indices = @transform_4, window_bounds = array<i64: 64, 32>}, {pipeline_mode = #tpu.pipeline_mode<synchronous>, transform_indices = @transform_5, window_bounds = array<i64: 1024, 32>}, {pipeline_mode = #tpu.pipeline_mode<synchronous>, transform_indices = @transform_6, window_bounds = array<i64: 32, 32>}, {transform_indices = @transform_7, window_bounds = array<i64: 1, 2, 128>}]} {
    %0 = tpu.iota {dimensions = array<i32: 1>} : vector<1x6xi32>
    %1 = arith.sitofp %0 : vector<1x6xi32> to vector<1x6xf32>
    %cst = arith.constant 1.800000e+00 : f32
    %2 = vector.broadcast %cst : f32 to vector<1x6xf32>
    %3 = arith.mulf %1, %2 : vector<1x6xf32>
    %cst_0 = arith.constant 1.000000e+00 : f32
    %4 = vector.broadcast %cst_0 : f32 to vector<1x6xf32>
    %5 = arith.addf %4, %3 : vector<1x6xf32>
    %cst_1 = arith.constant 6.28318548 : f32
    %6 = vector.broadcast %cst_1 : f32 to vector<1x6xf32>
    %7 = arith.mulf %5, %6 : vector<1x6xf32>
    %c0 = arith.constant 0 : index
    %c0_2 = arith.constant 0 : index
    %c0_3 = arith.constant 0 : index
    %8 = vector.load %arg1[%c0, %c0_2, %c0_3] : memref<1x2x4xf32, #tpu.memory_space<vmem>>, vector<1x2x1xf32>
    %9 = vector.shape_cast %8 : vector<1x2x1xf32> to vector<2x1xf32>
    %10 = vector.broadcast %9 : vector<2x1xf32> to vector<2x6xf32>
    %11 = vector.broadcast %7 : vector<1x6xf32> to vector<2x6xf32>
    %12 = arith.mulf %10, %11 : vector<2x6xf32>
    %13 = math.sin %12 : vector<2x6xf32>
    %c0_4 = arith.constant 0 : index
    %c0_5 = arith.constant 0 : index
    %14 = vector.load %arg9[%c0_4, %c0_5] : memref<2x48xf32, #tpu.memory_space<vmem>>, vector<2x6xf32>
    tpu.vector_store %arg9[%c0_4, %c0_5], %13 {strides = array<i32>} : memref<2x48xf32, #tpu.memory_space<vmem>>, vector<2x6xf32>,
    %15 = math.cos %12 : vector<2x6xf32>
    %c0_6 = arith.constant 0 : index
    %c6 = arith.constant 6 : index
    %16 = vector.load %arg9[%c0_6, %c6] : memref<2x48xf32, #tpu.memory_space<vmem>>, vector<2x6xf32>
    tpu.vector_store %arg9[%c0_6, %c6], %15 {strides = array<i32>} : memref<2x48xf32, #tpu.memory_space<vmem>>, vector<2x6xf32>,
    %c0_7 = arith.constant 0 : index
    %c0_8 = arith.constant 0 : index
    %c1 = arith.constant 1 : index
    %17 = vector.load %arg1[%c0_7, %c0_8, %c1] : memref<1x2x4xf32, #tpu.memory_space<vmem>>, vector<1x2x1xf32>
    %18 = vector.shape_cast %17 : vector<1x2x1xf32> to vector<2x1xf32>
    %19 = vector.broadcast %18 : vector<2x1xf32> to vector<2x6xf32>
    %20 = vector.broadcast %7 : vector<1x6xf32> to vector<2x6xf32>
    %21 = arith.mulf %19, %20 : vector<2x6xf32>
    %22 = math.sin %21 : vector<2x6xf32>
    %c0_9 = arith.constant 0 : index
    %c12 = arith.constant 12 : index
    %23 = vector.load %arg9[%c0_9, %c12] : memref<2x48xf32, #tpu.memory_space<vmem>>, vector<2x6xf32>
    tpu.vector_store %arg9[%c0_9, %c12], %22 {strides = array<i32>} : memref<2x48xf32, #tpu.memory_space<vmem>>, vector<2x6xf32>,
    %24 = math.cos %21 : vector<2x6xf32>
    %c0_10 = arith.constant 0 : index
    %c18 = arith.constant 18 : index
    %25 = vector.load %arg9[%c0_10, %c18] : memref<2x48xf32, #tpu.memory_space<vmem>>, vector<2x6xf32>
    tpu.vector_store %arg9[%c0_10, %c18], %24 {strides = array<i32>} : memref<2x48xf32, #tpu.memory_space<vmem>>, vector<2x6xf32>,
    %c0_11 = arith.constant 0 : index
    %c0_12 = arith.constant 0 : index
    %c2 = arith.constant 2 : index
    %26 = vector.load %arg1[%c0_11, %c0_12, %c2] : memref<1x2x4xf32, #tpu.memory_space<vmem>>, vector<1x2x1xf32>
    %27 = vector.shape_cast %26 : vector<1x2x1xf32> to vector<2x1xf32>
    %28 = vector.broadcast %27 : vector<2x1xf32> to vector<2x6xf32>
    %29 = vector.broadcast %7 : vector<1x6xf32> to vector<2x6xf32>
    %30 = arith.mulf %28, %29 : vector<2x6xf32>
    %31 = math.sin %30 : vector<2x6xf32>
    %c0_13 = arith.constant 0 : index
    %c24 = arith.constant 24 : index
    %32 = vector.load %arg9[%c0_13, %c24] : memref<2x48xf32, #tpu.memory_space<vmem>>, vector<2x6xf32>
    tpu.vector_store %arg9[%c0_13, %c24], %31 {strides = array<i32>} : memref<2x48xf32, #tpu.memory_space<vmem>>, vector<2x6xf32>,
    %33 = math.cos %30 : vector<2x6xf32>
    %c0_14 = arith.constant 0 : index
    %c30 = arith.constant 30 : index
    %34 = vector.load %arg9[%c0_14, %c30] : memref<2x48xf32, #tpu.memory_space<vmem>>, vector<2x6xf32>
    tpu.vector_store %arg9[%c0_14, %c30], %33 {strides = array<i32>} : memref<2x48xf32, #tpu.memory_space<vmem>>, vector<2x6xf32>,
    %c0_15 = arith.constant 0 : index
    %c0_16 = arith.constant 0 : index
    %c3 = arith.constant 3 : index
    %35 = vector.load %arg1[%c0_15, %c0_16, %c3] : memref<1x2x4xf32, #tpu.memory_space<vmem>>, vector<1x2x1xf32>
    %36 = vector.shape_cast %35 : vector<1x2x1xf32> to vector<2x1xf32>
    %37 = vector.broadcast %36 : vector<2x1xf32> to vector<2x6xf32>
    %38 = vector.broadcast %7 : vector<1x6xf32> to vector<2x6xf32>
    %39 = arith.mulf %37, %38 : vector<2x6xf32>
    %40 = math.sin %39 : vector<2x6xf32>
    %c0_17 = arith.constant 0 : index
    %c36 = arith.constant 36 : index
    %41 = vector.load %arg9[%c0_17, %c36] : memref<2x48xf32, #tpu.memory_space<vmem>>, vector<2x6xf32>
    tpu.vector_store %arg9[%c0_17, %c36], %40 {strides = array<i32>} : memref<2x48xf32, #tpu.memory_space<vmem>>, vector<2x6xf32>,
    %42 = math.cos %39 : vector<2x6xf32>
    %c0_18 = arith.constant 0 : index
    %c42 = arith.constant 42 : index
    %43 = vector.load %arg9[%c0_18, %c42] : memref<2x48xf32, #tpu.memory_space<vmem>>, vector<2x6xf32>
    tpu.vector_store %arg9[%c0_18, %c42], %42 {strides = array<i32>} : memref<2x48xf32, #tpu.memory_space<vmem>>, vector<2x6xf32>,
    %c0_19 = arith.constant 0 : index
    %c0_20 = arith.constant 0 : index
    %44 = vector.load %arg9[%c0_19, %c0_20] : memref<2x48xf32, #tpu.memory_space<vmem>>, vector<2x48xf32>
    %c0_21 = arith.constant 0 : index
    %c0_22 = arith.constant 0 : index
    %45 = vector.load %arg3[%c0_21, %c0_22] : memref<48x64xf32, #tpu.memory_space<vmem>>, vector<48x64xf32>
    %46 = arith.truncf %44 : vector<2x48xf32> to vector<2x48xbf16>
    %47 = arith.truncf %45 : vector<48x64xf32> to vector<48x64xbf16>
    %cst_23 = arith.constant dense<0.000000e+00> : vector<2x64xf32>
    %48 = tpu.matmul %46, %47, %cst_23 {dimension_numbers = #tpu.dot_dimension_numbers<[1], [0], [0], [1], [0, 0, 1, 1], [], []>} : vector<2x48xbf16>, vector<48x64xbf16>, vector<2x64xf32> -> vector<2x64xf32>
    %cst_24 = arith.constant dense<0.000000e+00> : vector<64xf32>
    %49 = vector.multi_reduction <add>, %48, %cst_24 [0] : vector<2x64xf32> to vector<64xf32>
    %50 = vector.shape_cast %49 : vector<64xf32> to vector<1x64xf32>
    %cst_25 = arith.constant 2.000000e+00 : f32
    %51 = vector.broadcast %cst_25 : f32 to vector<1x64xf32>
    %52 = arith.divf %50, %51 : vector<1x64xf32>
    %53 = vector.broadcast %52 : vector<1x64xf32> to vector<2x64xf32>
    %54 = arith.subf %48, %53 : vector<2x64xf32>
    %55 = arith.mulf %54, %54 : vector<2x64xf32>
    %cst_26 = arith.constant dense<0.000000e+00> : vector<64xf32>
    %56 = vector.multi_reduction <add>, %55, %cst_26 [0] : vector<2x64xf32> to vector<64xf32>
    %57 = vector.shape_cast %56 : vector<64xf32> to vector<1x64xf32>
    %cst_27 = arith.constant 2.000000e+00 : f32
    %58 = vector.broadcast %cst_27 : f32 to vector<1x64xf32>
    %59 = arith.divf %57, %58 : vector<1x64xf32>
    %60 = vector.broadcast %52 : vector<1x64xf32> to vector<2x64xf32>
    %61 = arith.subf %48, %60 : vector<2x64xf32>
    %cst_28 = arith.constant 9.99999974E-6 : f32
    %62 = vector.broadcast %cst_28 : f32 to vector<1x64xf32>
    %63 = arith.addf %59, %62 : vector<1x64xf32>
    %64 = math.rsqrt %63 : vector<1x64xf32>
    %65 = vector.broadcast %64 : vector<1x64xf32> to vector<2x64xf32>
    %66 = arith.mulf %61, %65 : vector<2x64xf32>
    %cst_29 = arith.constant 0.000000e+00 : f32
    %67 = vector.broadcast %cst_29 : f32 to vector<2x64xf32>
    %68 = arith.maximumf %66, %67 : vector<2x64xf32>
    %c0_30 = arith.constant 0 : index
    %c0_31 = arith.constant 0 : index
    %69 = vector.load %arg4[%c0_30, %c0_31] : memref<64x64xf32, #tpu.memory_space<vmem>>, vector<64x64xf32>
    %70 = arith.truncf %68 : vector<2x64xf32> to vector<2x64xbf16>
    %71 = arith.truncf %69 : vector<64x64xf32> to vector<64x64xbf16>
    %cst_32 = arith.constant dense<0.000000e+00> : vector<2x64xf32>
    %72 = tpu.matmul %70, %71, %cst_32 {dimension_numbers = #tpu.dot_dimension_numbers<[1], [0], [0], [1], [0, 0, 1, 1], [], []>} : vector<2x64xbf16>, vector<64x64xbf16>, vector<2x64xf32> -> vector<2x64xf32>
    %cst_33 = arith.constant dense<0.000000e+00> : vector<64xf32>
    %73 = vector.multi_reduction <add>, %72, %cst_33 [0] : vector<2x64xf32> to vector<64xf32>
    %74 = vector.shape_cast %73 : vector<64xf32> to vector<1x64xf32>
    %cst_34 = arith.constant 2.000000e+00 : f32
    %75 = vector.broadcast %cst_34 : f32 to vector<1x64xf32>
    %76 = arith.divf %74, %75 : vector<1x64xf32>
    %77 = vector.broadcast %76 : vector<1x64xf32> to vector<2x64xf32>
    %78 = arith.subf %72, %77 : vector<2x64xf32>
    %79 = arith.mulf %78, %78 : vector<2x64xf32>
    %cst_35 = arith.constant dense<0.000000e+00> : vector<64xf32>
    %80 = vector.multi_reduction <add>, %79, %cst_35 [0] : vector<2x64xf32> to vector<64xf32>
    %81 = vector.shape_cast %80 : vector<64xf32> to vector<1x64xf32>
    %cst_36 = arith.constant 2.000000e+00 : f32
    %82 = vector.broadcast %cst_36 : f32 to vector<1x64xf32>
    %83 = arith.divf %81, %82 : vector<1x64xf32>
    %84 = vector.broadcast %76 : vector<1x64xf32> to vector<2x64xf32>
    %85 = arith.subf %72, %84 : vector<2x64xf32>
    %cst_37 = arith.constant 9.99999974E-6 : f32
    %86 = vector.broadcast %cst_37 : f32 to vector<1x64xf32>
    %87 = arith.addf %83, %86 : vector<1x64xf32>
    %88 = math.rsqrt %87 : vector<1x64xf32>
    %89 = vector.broadcast %88 : vector<1x64xf32> to vector<2x64xf32>
    %90 = arith.mulf %85, %89 : vector<2x64xf32>
    %cst_38 = arith.constant 0.000000e+00 : f32
    %91 = vector.broadcast %cst_38 : f32 to vector<2x64xf32>
    %92 = arith.maximumf %90, %91 : vector<2x64xf32>
    %c0_39 = arith.constant 0 : index
    %c0_40 = arith.constant 0 : index
    %93 = vector.load %arg5[%c0_39, %c0_40] : memref<64x32xf32, #tpu.memory_space<vmem>>, vector<64x32xf32>
    %94 = arith.truncf %92 : vector<2x64xf32> to vector<2x64xbf16>
    %95 = arith.truncf %93 : vector<64x32xf32> to vector<64x32xbf16>
    %cst_41 = arith.constant dense<0.000000e+00> : vector<2x32xf32>
    %96 = tpu.matmul %94, %95, %cst_41 {dimension_numbers = #tpu.dot_dimension_numbers<[1], [0], [0], [1], [0, 0, 1, 1], [], []>} : vector<2x64xbf16>, vector<64x32xbf16>, vector<2x32xf32> -> vector<2x32xf32>
    %cst_42 = arith.constant dense<0.000000e+00> : vector<32xf32>
    %97 = vector.multi_reduction <add>, %96, %cst_42 [0] : vector<2x32xf32> to vector<32xf32>
    %98 = vector.shape_cast %97 : vector<32xf32> to vector<1x32xf32>
    %cst_43 = arith.constant 2.000000e+00 : f32
    %99 = vector.broadcast %cst_43 : f32 to vector<1x32xf32>
    %100 = arith.divf %98, %99 : vector<1x32xf32>
    %101 = vector.broadcast %100 : vector<1x32xf32> to vector<2x32xf32>
    %102 = arith.subf %96, %101 : vector<2x32xf32>
    %103 = arith.mulf %102, %102 : vector<2x32xf32>
    %cst_44 = arith.constant dense<0.000000e+00> : vector<32xf32>
    %104 = vector.multi_reduction <add>, %103, %cst_44 [0] : vector<2x32xf32> to vector<32xf32>
    %105 = vector.shape_cast %104 : vector<32xf32> to vector<1x32xf32>
    %cst_45 = arith.constant 2.000000e+00 : f32
    %106 = vector.broadcast %cst_45 : f32 to vector<1x32xf32>
    %107 = arith.divf %105, %106 : vector<1x32xf32>
    %108 = vector.broadcast %100 : vector<1x32xf32> to vector<2x32xf32>
    %109 = arith.subf %96, %108 : vector<2x32xf32>
    %cst_46 = arith.constant 9.99999974E-6 : f32
    %110 = vector.broadcast %cst_46 : f32 to vector<1x32xf32>
    %111 = arith.addf %107, %110 : vector<1x32xf32>
    %112 = math.rsqrt %111 : vector<1x32xf32>
    %113 = vector.broadcast %112 : vector<1x32xf32> to vector<2x32xf32>
    %114 = arith.mulf %109, %113 : vector<2x32xf32>
    %c0_47 = arith.constant 0 : index
    %c0_48 = arith.constant 0 : index
    %c0_49 = arith.constant 0 : index
    %115 = vector.load %arg2[%c0_47, %c0_48, %c0_49] : memref<1x2x1024xf32, #tpu.memory_space<vmem>>, vector<1x2x1024xf32>
    %116 = vector.shape_cast %115 : vector<1x2x1024xf32> to vector<2x1024xf32>
    %c0_50 = arith.constant 0 : index
    %c0_51 = arith.constant 0 : index
    %117 = vector.load %arg6[%c0_50, %c0_51] : memref<1024x32xf32, #tpu.memory_space<vmem>>, vector<1024x32xf32>
    %118 = arith.truncf %116 : vector<2x1024xf32> to vector<2x1024xbf16>
    %119 = arith.truncf %117 : vector<1024x32xf32> to vector<1024x32xbf16>
    %cst_52 = arith.constant dense<0.000000e+00> : vector<2x32xf32>
    %120 = tpu.matmul %118, %119, %cst_52 {dimension_numbers = #tpu.dot_dimension_numbers<[1], [0], [0], [1], [0, 0, 1, 1], [], []>} : vector<2x1024xbf16>, vector<1024x32xbf16>, vector<2x32xf32> -> vector<2x32xf32>
    %c0_53 = arith.constant 0 : index
    %c0_54 = arith.constant 0 : index
    %121 = vector.load %arg7[%c0_53, %c0_54] : memref<32x32xf32, #tpu.memory_space<vmem>>, vector<32x32xf32>
    %122 = arith.truncf %114 : vector<2x32xf32> to vector<2x32xbf16>
    %123 = arith.truncf %121 : vector<32x32xf32> to vector<32x32xbf16>
    %cst_55 = arith.constant dense<0.000000e+00> : vector<2x32xf32>
    %124 = tpu.matmul %122, %123, %cst_55 {dimension_numbers = #tpu.dot_dimension_numbers<[1], [0], [0], [1], [0, 0, 1, 1], [], []>} : vector<2x32xbf16>, vector<32x32xbf16>, vector<2x32xf32> -> vector<2x32xf32>
    %125 = arith.mulf %120, %120 : vector<2x32xf32>
    %cst_56 = arith.constant dense<0.000000e+00> : vector<2xf32>
    %126 = vector.multi_reduction <add>, %125, %cst_56 [1] : vector<2x32xf32> to vector<2xf32>
    %127 = vector.shape_cast %126 : vector<2xf32> to vector<2x1xf32>
    %128 = math.sqrt %127 : vector<2x1xf32>
    %cst_57 = arith.constant 9.99999996E-13 : f32
    %129 = vector.broadcast %cst_57 : f32 to vector<2x1xf32>
    %130 = arith.maximumf %128, %129 : vector<2x1xf32>
    %131 = vector.broadcast %130 : vector<2x1xf32> to vector<2x32xf32>
    %132 = arith.divf %120, %131 : vector<2x32xf32>
    %133 = arith.mulf %124, %124 : vector<2x32xf32>
    %cst_58 = arith.constant dense<0.000000e+00> : vector<2xf32>
    %134 = vector.multi_reduction <add>, %133, %cst_58 [1] : vector<2x32xf32> to vector<2xf32>
    %135 = vector.shape_cast %134 : vector<2xf32> to vector<2x1xf32>
    %136 = math.sqrt %135 : vector<2x1xf32>
    %cst_59 = arith.constant 9.99999996E-13 : f32
    %137 = vector.broadcast %cst_59 : f32 to vector<2x1xf32>
    %138 = arith.maximumf %136, %137 : vector<2x1xf32>
    %139 = vector.broadcast %138 : vector<2x1xf32> to vector<2x32xf32>
    %140 = arith.divf %124, %139 : vector<2x32xf32>
    %141 = arith.truncf %132 : vector<2x32xf32> to vector<2x32xbf16>
    %142 = arith.truncf %140 : vector<2x32xf32> to vector<2x32xbf16>
    %cst_60 = arith.constant dense<0.000000e+00> : vector<2x2xf32>
    %143 = tpu.matmul %141, %142, %cst_60 {dimension_numbers = #tpu.dot_dimension_numbers<[1], [1], [0], [0], [0, 0, 1, 0], [], []>} : vector<2x32xbf16>, vector<2x32xbf16>, vector<2x2xf32> -> vector<2x2xf32>
    %cst_61 = arith.constant 14.2857141 : f32
    %144 = vector.broadcast %cst_61 : f32 to vector<2x2xf32>
    %145 = arith.mulf %143, %144 : vector<2x2xf32>
    %cst_62 = arith.constant dense<0xFF800000> : vector<2xf32>
    %146 = vector.multi_reduction <maximumf>, %145, %cst_62 [1] : vector<2x2xf32> to vector<2xf32>
    %147 = vector.shape_cast %146 : vector<2xf32> to vector<2x1xf32>
    %148 = vector.broadcast %147 : vector<2x1xf32> to vector<2x2xf32>
    %149 = arith.subf %145, %148 : vector<2x2xf32>
    %150 = math.exp %149 : vector<2x2xf32>
    %cst_63 = arith.constant dense<0.000000e+00> : vector<2xf32>
    %151 = vector.multi_reduction <add>, %150, %cst_63 [1] : vector<2x2xf32> to vector<2xf32>
    %152 = vector.shape_cast %151 : vector<2xf32> to vector<2x1xf32>
    %153 = math.log %152 : vector<2x1xf32>
    %154 = arith.addf %147, %153 : vector<2x1xf32>
    %155 = tpu.iota {dimensions = array<i32: 0>} : vector<2x2xi32>
    %156 = tpu.iota {dimensions = array<i32: 1>} : vector<2x2xi32>
    %157 = arith.cmpi eq, %155, %156 : vector<2x2xi32>
    %cst_64 = arith.constant 0.000000e+00 : f32
    %158 = vector.broadcast %cst_64 : f32 to vector<2x2xf32>
    %159 = arith.select %157, %145, %158 : vector<2x2xi1>, vector<2x2xf32>
    %cst_65 = arith.constant dense<0.000000e+00> : vector<2xf32>
    %160 = vector.multi_reduction <add>, %159, %cst_65 [1] : vector<2x2xf32> to vector<2xf32>
    %161 = vector.shape_cast %160 : vector<2xf32> to vector<2x1xf32>
    %162 = arith.subf %154, %161 : vector<2x1xf32>
    %cst_66 = arith.constant dense<0.000000e+00> : vector<1xf32>
    %163 = vector.multi_reduction <add>, %162, %cst_66 [0] : vector<2x1xf32> to vector<1xf32>
    %164 = vector.shape_cast %163 : vector<1xf32> to vector<1x1xf32>
    %cst_67 = arith.constant 5.000000e-01 : f32
    %165 = vector.broadcast %cst_67 : f32 to vector<1x1xf32>
    %166 = arith.mulf %164, %165 : vector<1x1xf32>
    %cst_68 = arith.constant 0.000000e+00 : f32
    %167 = vector.broadcast %cst_68 : f32 to vector<2x128xf32>
    %c0_69 = arith.constant 0 : index
    %c0_70 = arith.constant 0 : index
    %c0_71 = arith.constant 0 : index
    %168 = vector.load %arg8[%c0_69, %c0_70, %c0_71] : memref<1x2x128xf32, #tpu.memory_space<vmem>>, vector<1x2x128xf32>
    %169 = vector.shape_cast %168 : vector<1x2x128xf32> to vector<2x128xf32>
    %170 = vector.shape_cast %167 : vector<2x128xf32> to vector<1x2x128xf32>
    tpu.vector_store %arg8[%c0_69, %c0_70, %c0_71], %170 {strides = array<i32>} : memref<1x2x128xf32, #tpu.memory_space<vmem>>, vector<1x2x128xf32>,
    %c0_72 = arith.constant 0 : index
    %c0_73 = arith.constant 0 : index
    %c0_74 = arith.constant 0 : index
    %171 = vector.load %arg8[%c0_72, %c0_73, %c0_74] : memref<1x2x128xf32, #tpu.memory_space<vmem>>, vector<1x2x32xf32>
    %172 = vector.shape_cast %171 : vector<1x2x32xf32> to vector<2x32xf32>
    %173 = vector.shape_cast %120 : vector<2x32xf32> to vector<1x2x32xf32>
    tpu.vector_store %arg8[%c0_72, %c0_73, %c0_74], %173 {strides = array<i32>} : memref<1x2x128xf32, #tpu.memory_space<vmem>>, vector<1x2x32xf32>,
    %c0_75 = arith.constant 0 : index
    %c0_76 = arith.constant 0 : index
    %c32 = arith.constant 32 : index
    %174 = vector.load %arg8[%c0_75, %c0_76, %c32] : memref<1x2x128xf32, #tpu.memory_space<vmem>>, vector<1x2x32xf32>
    %175 = vector.shape_cast %174 : vector<1x2x32xf32> to vector<2x32xf32>
    %176 = vector.shape_cast %124 : vector<2x32xf32> to vector<1x2x32xf32>
    tpu.vector_store %arg8[%c0_75, %c0_76, %c32], %176 {strides = array<i32>} : memref<1x2x128xf32, #tpu.memory_space<vmem>>, vector<1x2x32xf32>,
    %c0_77 = arith.constant 0 : index
    %c0_78 = arith.constant 0 : index
    %c64 = arith.constant 64 : index
    %177 = vector.load %arg8[%c0_77, %c0_78, %c64] : memref<1x2x128xf32, #tpu.memory_space<vmem>>, vector<1x2x2xf32>
    %178 = vector.shape_cast %177 : vector<1x2x2xf32> to vector<2x2xf32>
    %179 = vector.shape_cast %145 : vector<2x2xf32> to vector<1x2x2xf32>
    tpu.vector_store %arg8[%c0_77, %c0_78, %c64], %179 {strides = array<i32>} : memref<1x2x128xf32, #tpu.memory_space<vmem>>, vector<1x2x2xf32>,
    %180 = vector.shape_cast %166 : vector<1x1xf32> to vector<1x1xf32>
    %181 = vector.broadcast %180 : vector<1x1xf32> to vector<2x1xf32>
    %c0_79 = arith.constant 0 : index
    %c0_80 = arith.constant 0 : index
    %c66 = arith.constant 66 : index
    %182 = vector.load %arg8[%c0_79, %c0_80, %c66] : memref<1x2x128xf32, #tpu.memory_space<vmem>>, vector<1x2x1xf32>
    %183 = vector.shape_cast %182 : vector<1x2x1xf32> to vector<2x1xf32>
    %184 = vector.shape_cast %181 : vector<2x1xf32> to vector<1x2x1xf32>
    tpu.vector_store %arg8[%c0_79, %c0_80, %c66], %184 {strides = array<i32>} : memref<1x2x128xf32, #tpu.memory_space<vmem>>, vector<1x2x1xf32>,
    return
  }
  func.func @transform_0(%arg0: i32) -> (i32, i32, i32) {
    %c0_i32 = arith.constant 0 : i32
    %c0_i32_0 = arith.constant 0 : i32
    %c0_i32_1 = arith.constant 0 : i32
    return %arg0, %c0_i32, %c0_i32_0 : i32, i32, i32
  }
  func.func @transform_1(%arg0: i32) -> (i32, i32, i32) {
    %c0_i32 = arith.constant 0 : i32
    %c0_i32_0 = arith.constant 0 : i32
    %c0_i32_1 = arith.constant 0 : i32
    return %arg0, %c0_i32, %c0_i32_0 : i32, i32, i32
  }
  func.func @transform_2(%arg0: i32) -> (i32, i32) {
    %c0_i32 = arith.constant 0 : i32
    %c0_i32_0 = arith.constant 0 : i32
    %c0_i32_1 = arith.constant 0 : i32
    return %c0_i32, %c0_i32_0 : i32, i32
  }
  func.func @transform_3(%arg0: i32) -> (i32, i32) {
    %c0_i32 = arith.constant 0 : i32
    %c0_i32_0 = arith.constant 0 : i32
    %c0_i32_1 = arith.constant 0 : i32
    return %c0_i32, %c0_i32_0 : i32, i32
  }
  func.func @transform_4(%arg0: i32) -> (i32, i32) {
    %c0_i32 = arith.constant 0 : i32
    %c0_i32_0 = arith.constant 0 : i32
    %c0_i32_1 = arith.constant 0 : i32
    return %c0_i32, %c0_i32_0 : i32, i32
  }
  func.func @transform_5(%arg0: i32) -> (i32, i32) {
    %c0_i32 = arith.constant 0 : i32
    %c0_i32_0 = arith.constant 0 : i32
    %c0_i32_1 = arith.constant 0 : i32
    return %c0_i32, %c0_i32_0 : i32, i32
  }
  func.func @transform_6(%arg0: i32) -> (i32, i32) {
    %c0_i32 = arith.constant 0 : i32
    %c0_i32_0 = arith.constant 0 : i32
    %c0_i32_1 = arith.constant 0 : i32
    return %c0_i32, %c0_i32_0 : i32, i32
  }
  func.func @transform_7(%arg0: i32) -> (i32, i32, i32) {
    %c0_i32 = arith.constant 0 : i32
    %c0_i32_0 = arith.constant 0 : i32
    %c0_i32_1 = arith.constant 0 : i32
    return %arg0, %c0_i32, %c0_i32_0 : i32, i32, i32
  }
}

</mosaic_0001>

<llo_original>
// kernel: kqcon_forward.1
$region0: #{kqcon_forward.1}
  #allocation0 [shape = 'u32[]', space=smem, size = 0x4, offset = 0x4, fixed_abs, tag = 'smem constant byte address 0x4 - core index']
  #allocation1 [shape = 'u32[144,128]{1,0:T(1,128)}', space=vmem, size = 0x12000, scoped, tag = 'internal scratch']
  #allocation2 [shape = 'f32[2,48]{1,0:T(2,128)}', space=vmem, size = 0x400, scoped, tag = 'scratch operand']
  %s0 = inlined_call_operand.vmem [shape: f32[2,2,4], index: 0, kind: input, shape index: {}]
  %s1 = inlined_call_operand.vmem [shape: f32[2,2,1024], index: 1, kind: input, shape index: {}]
  %s2 = inlined_call_operand.vmem [shape: f32[48,64], index: 2, kind: input, shape index: {}]
  %s3 = inlined_call_operand.vmem [shape: f32[64,64], index: 3, kind: input, shape index: {}]
  %s4 = inlined_call_operand.vmem [shape: f32[64,32], index: 4, kind: input, shape index: {}]
  %s5 = inlined_call_operand.vmem [shape: f32[1024,32], index: 5, kind: input, shape index: {}]
  %s6 = inlined_call_operand.vmem [shape: f32[32,32], index: 6, kind: input, shape index: {}]
  %s7 = inlined_call_operand.vmem [shape: f32[2,2,128], index: 7, kind: output, shape index: {}]
  %s8 = sld [smem:[#allocation0]]
  $region61: #{kqcon_forward.1} parent=0
    _
  %s10 = ssub.s32 1, %s8
  %s11 = scalar_select 0, %s10, %s8
  loop: start=0, step=1, limit=4
  $region2: #{kqcon_forward.1} parent=0 // loop_pre_header
    _
  $region3: #{kqcon_forward.1} parent=0 // loop_header
    %s13 = sphi 0, %s17
    %p14 = scmp.ge.s32.totalorder %s13, 4
    %s23 = sphi 0, %s25
    %s26 = sphi 0, %s23
    %s27 = sphi 0, %s26
    %s43 = sphi 0, %s27
    %s49 = sphi 0, %s51
    %s52 = sphi 0, %s49
    %s53 = sphi 0, %s52
    %s69 = sphi 0, %s53
    %s73 = sphi 0, %s73
    %s75 = sphi 0, %s73
    %s76 = sphi 0, %s75
    %s90 = sphi 0, %s76
    %s94 = sphi 0, %s94
    %s96 = sphi 0, %s94
    %s97 = sphi 0, %s96
    %s111 = sphi 0, %s97
    %s115 = sphi 0, %s115
    %s117 = sphi 0, %s115
    %s118 = sphi 0, %s117
    %s132 = sphi 0, %s118
    %s136 = sphi 0, %s136
    %s138 = sphi 0, %s136
    %s139 = sphi 0, %s138
    %s153 = sphi 0, %s139
    %s157 = sphi 0, %s157
    %s159 = sphi 0, %s157
    %s160 = sphi 0, %s159
    %s174 = sphi 0, %s160
    %s180 = sphi 0, %s182
    %s183 = sphi 0, %s180
    %s184 = sphi 0, %s183
    %s200 = sphi 0, %s184
  $region4: #{kqcon_forward.1} parent=0 // loop_header_branch
    %16 = sbr.rel (%p14) target = $region8
  $region5: #{kqcon_forward.1} parent=0 // loop_body
    %s18 = ssub.s32 %s13, 1
    %s19 = ssub.s32 %s13, 2
    %s20 = sadd.s32 %s13, 1
    %s21 = ssub.s32 %s13, %s20
    %p22 = scmp.eq.s32.totalorder %s21, 0
    %s24 = sadd.s32 %s23, 1
    %s25 = scalar_select %p22, %s23, %s24
    %p28 = pneg %p22
    %p29 = scmp.eq.s32.totalorder %s13, 1
    %p30 = por %p28, %p29
    %p31 = scmp.ne.s32.totalorder %s23, %s26
    %p32 = scmp.eq.s32.totalorder %s13, 0
    %p33 = por %p31, %p32
    %p34 = scmp.ne.s32.totalorder %s23, %s26
    %p35 = scmp.eq.s32.totalorder %s18, 1
    %p36 = por %p34, %p35
    %p37 = scmp.ne.s32.totalorder %s26, %s27
    %p38 = scmp.eq.s32.totalorder %s18, 0
    %p39 = por %p37, %p38
    %p40 = scmp.ne.s32.totalorder %s26, %s27
    %p41 = scmp.eq.s32.totalorder %s19, 1
    %p42 = por %p40, %p41
    %p44 = scmp.ne.s32.totalorder %s27, %s43
    %p45 = scmp.eq.s32.totalorder %s19, 0
    %p46 = por %p44, %p45
    %s47 = ssub.s32 %s13, %s20
    %p48 = scmp.eq.s32.totalorder %s47, 0
    %s50 = sadd.s32 %s49, 1
    %s51 = scalar_select %p48, %s49, %s50
    %p54 = pneg %p48
    %p55 = scmp.eq.s32.totalorder %s13, 1
    %p56 = por %p54, %p55
    %p57 = scmp.ne.s32.totalorder %s49, %s52
    %p58 = scmp.eq.s32.totalorder %s13, 0
    %p59 = por %p57, %p58
    %p60 = scmp.ne.s32.totalorder %s49, %s52
    %p61 = scmp.eq.s32.totalorder %s18, 1
    %p62 = por %p60, %p61
    %p63 = scmp.ne.s32.totalorder %s52, %s53
    %p64 = scmp.eq.s32.totalorder %s18, 0
    %p65 = por %p63, %p64
    %p66 = scmp.ne.s32.totalorder %s52, %s53
    %p67 = scmp.eq.s32.totalorder %s19, 1
    %p68 = por %p66, %p67
    %p70 = scmp.ne.s32.totalorder %s53, %s69
    %p71 = scmp.eq.s32.totalorder %s19, 0
    %p72 = por %p70, %p71
    %s74 = sadd.s32 %s73, 1
    %p77 = scmp.eq.s32.totalorder %s13, 1
    %p78 = scmp.ne.s32.totalorder %s73, %s75
    %p79 = scmp.eq.s32.totalorder %s13, 0
    %p80 = por %p78, %p79
    %p81 = scmp.ne.s32.totalorder %s73, %s75
    %p82 = scmp.eq.s32.totalorder %s18, 1
    %p83 = por %p81, %p82
    %p84 = scmp.ne.s32.totalorder %s75, %s76
    %p85 = scmp.eq.s32.totalorder %s18, 0
    %p86 = por %p84, %p85
    %p87 = scmp.ne.s32.totalorder %s75, %s76
    %p88 = scmp.eq.s32.totalorder %s19, 1
    %p89 = por %p87, %p88
    %p91 = scmp.ne.s32.totalorder %s76, %s90
    %p92 = scmp.eq.s32.totalorder %s19, 0
    %p93 = por %p91, %p92
    %s95 = sadd.s32 %s94, 1
    %p98 = scmp.eq.s32.totalorder %s13, 1
    %p99 = scmp.ne.s32.totalorder %s94, %s96
    %p100 = scmp.eq.s32.totalorder %s13, 0
    %p101 = por %p99, %p100
    %p102 = scmp.ne.s32.totalorder %s94, %s96
    %p103 = scmp.eq.s32.totalorder %s18, 1
    %p104 = por %p102, %p103
    %p105 = scmp.ne.s32.totalorder %s96, %s97
    %p106 = scmp.eq.s32.totalorder %s18, 0
    %p107 = por %p105, %p106
    %p108 = scmp.ne.s32.totalorder %s96, %s97
    %p109 = scmp.eq.s32.totalorder %s19, 1
    %p110 = por %p108, %p109
    %p112 = scmp.ne.s32.totalorder %s97, %s111
    %p113 = scmp.eq.s32.totalorder %s19, 0
    %p114 = por %p112, %p113
    %s116 = sadd.s32 %s115, 1
    %p119 = scmp.eq.s32.totalorder %s13, 1
    %p120 = scmp.ne.s32.totalorder %s115, %s117
    %p121 = scmp.eq.s32.totalorder %s13, 0
    %p122 = por %p120, %p121
    %p123 = scmp.ne.s32.totalorder %s115, %s117
    %p124 = scmp.eq.s32.totalorder %s18, 1
    %p125 = por %p123, %p124
    %p126 = scmp.ne.s32.totalorder %s117, %s118
    %p127 = scmp.eq.s32.totalorder %s18, 0
    %p128 = por %p126, %p127
    %p129 = scmp.ne.s32.totalorder %s117, %s118
    %p130 = scmp.eq.s32.totalorder %s19, 1
    %p131 = por %p129, %p130
    %p133 = scmp.ne.s32.totalorder %s118, %s132
    %p134 = scmp.eq.s32.totalorder %s19, 0
    %p135 = por %p133, %p134
    %s137 = sadd.s32 %s136, 1
    %p140 = scmp.eq.s32.totalorder %s13, 1
    %p141 = scmp.ne.s32.totalorder %s136, %s138
    %p142 = scmp.eq.s32.totalorder %s13, 0
    %p143 = por %p141, %p142
    %p144 = scmp.ne.s32.totalorder %s136, %s138
    %p145 = scmp.eq.s32.totalorder %s18, 1
    %p146 = por %p144, %p145
    %p147 = scmp.ne.s32.totalorder %s138, %s139
    %p148 = scmp.eq.s32.totalorder %s18, 0
    %p149 = por %p147, %p148
    %p150 = scmp.ne.s32.totalorder %s138, %s139
    %p151 = scmp.eq.s32.totalorder %s19, 1
    %p152 = por %p150, %p151
    %p154 = scmp.ne.s32.totalorder %s139, %s153
    %p155 = scmp.eq.s32.totalorder %s19, 0
    %p156 = por %p154, %p155
    %s158 = sadd.s32 %s157, 1
    %p161 = scmp.eq.s32.totalorder %s13, 1
    %p162 = scmp.ne.s32.totalorder %s157, %s159
    %p163 = scmp.eq.s32.totalorder %s13, 0
    %p164 = por %p162, %p163
    %p165 = scmp.ne.s32.totalorder %s157, %s159
    %p166 = scmp.eq.s32.totalorder %s18, 1
    %p167 = por %p165, %p166
    %p168 = scmp.ne.s32.totalorder %s159, %s160
    %p169 = scmp.eq.s32.totalorder %s18, 0
    %p170 = por %p168, %p169
    %p171 = scmp.ne.s32.totalorder %s159, %s160
    %p172 = scmp.eq.s32.totalorder %s19, 1
    %p173 = por %p171, %p172
    %p175 = scmp.ne.s32.totalorder %s160, %s174
    %p176 = scmp.eq.s32.totalorder %s19, 0
    %p177 = por %p175, %p176
    %s178 = ssub.s32 %s13, %s20
    %p179 = scmp.eq.s32.totalorder %s178, 0
    %s181 = sadd.s32 %s180, 1
    %s182 = scalar_select %p179, %s180, %s181
    %p185 = pneg %p179
    %p186 = scmp.eq.s32.totalorder %s13, 1
    %p187 = por %p185, %p186
    %p188 = scmp.ne.s32.totalorder %s180, %s183
    %p189 = scmp.eq.s32.totalorder %s13, 0
    %p190 = por %p188, %p189
    %p191 = scmp.ne.s32.totalorder %s180, %s183
    %p192 = scmp.eq.s32.totalorder %s18, 1
    %p193 = por %p191, %p192
    %p194 = scmp.ne.s32.totalorder %s183, %s184
    %p195 = scmp.eq.s32.totalorder %s18, 0
    %p196 = por %p194, %p195
    %p197 = scmp.ne.s32.totalorder %s183, %s184
    %p198 = scmp.eq.s32.totalorder %s19, 1
    %p199 = por %p197, %p198
    %p201 = scmp.ne.s32.totalorder %s184, %s200
    %p202 = scmp.eq.s32.totalorder %s19, 0
    %p203 = por %p201, %p202
    %p204 = scmp.le.s32.totalorder 1, %s13
    %p205 = scmp.lt.s32.totalorder %s13, 3
    %p206 = pnand %p204, %p205
    %p207 = pneg %p206
    // Predicated region
    $region9: #{kqcon_forward.1} parent=5 // pred_check
      _
    $region10: #{kqcon_forward.1} parent=5 // pred_check_branch
      %209 = sbr.rel (%p206) target = $region12
    $region11: #{kqcon_forward.1} parent=5 // pred_region
      %s210 = ssub.s32 %s13, 1
      // Predicated region
      $region13: #{kqcon_forward.1} parent=11 // pred_check
        %p211 = pneg %p86
      $region14: #{kqcon_forward.1} parent=11 // pred_check_branch
        %213 = sbr.rel (%p211) target = $region16
      $region15: #{kqcon_forward.1} parent=11 // pred_region
        _
      $region16: #{kqcon_forward.1} parent=11 // pred_fallthru
        _
      // Predicated region
      $region17: #{kqcon_forward.1} parent=11 // pred_check
        %p214 = pneg %p107
      $region18: #{kqcon_forward.1} parent=11 // pred_check_branch
        %216 = sbr.rel (%p214) target = $region20
      $region19: #{kqcon_forward.1} parent=11 // pred_region
        _
      $region20: #{kqcon_forward.1} parent=11 // pred_fallthru
        _
      // Predicated region
      $region21: #{kqcon_forward.1} parent=11 // pred_check
        %p217 = pneg %p128
      $region22: #{kqcon_forward.1} parent=11 // pred_check_branch
        %219 = sbr.rel (%p217) target = $region24
      $region23: #{kqcon_forward.1} parent=11 // pred_region
        _
      $region24: #{kqcon_forward.1} parent=11 // pred_fallthru
        _
      // Predicated region
      $region25: #{kqcon_forward.1} parent=11 // pred_check
        %p220 = pneg %p149
      $region26: #{kqcon_forward.1} parent=11 // pred_check_branch
        %222 = sbr.rel (%p220) target = $region28
      $region27: #{kqcon_forward.1} parent=11 // pred_region
        _
      $region28: #{kqcon_forward.1} parent=11 // pred_fallthru
        _
      // Predicated region
      $region29: #{kqcon_forward.1} parent=11 // pred_check
        %p223 = pneg %p170
      $region30: #{kqcon_forward.1} parent=11 // pred_check_branch
        %225 = sbr.rel (%p223) target = $region32
      $region31: #{kqcon_forward.1} parent=11 // pred_region
        _
      $region32: #{kqcon_forward.1} parent=11 // pred_fallthru
        _
    $region12: #{kqcon_forward.1} parent=5 // pred_fallthru
      _
    %p226 = scmp.lt.s32.totalorder %s13, 2
    // Predicated region
    $region33: #{kqcon_forward.1} parent=5 // pred_check
      %p227 = pneg %p226
    $region34: #{kqcon_forward.1} parent=5 // pred_check_branch
      %229 = sbr.rel (%p227) target = $region36
    $region35: #{kqcon_forward.1} parent=5 // pred_region
      // Predicated region
      $region37: #{kqcon_forward.1} parent=35 // pred_check
        %p230 = pneg %p33
      $region38: #{kqcon_forward.1} parent=35 // pred_check_branch
        %232 = sbr.rel (%p230) target = $region40
      $region39: #{kqcon_forward.1} parent=35 // pred_region
        %p233 = scmp.lt.s32.totalorder %s13, 1
        %s234 = scalar_select %p233, %s13, 1
        %s235 = smul.addr %s234, 2
        %s236 = scalar_lea.vmem %s0, %s235
      $region40: #{kqcon_forward.1} parent=35 // pred_fallthru
        _
      // Predicated region
      $region41: #{kqcon_forward.1} parent=35 // pred_check
        %p237 = pneg %p59
      $region42: #{kqcon_forward.1} parent=35 // pred_check_branch
        %239 = sbr.rel (%p237) target = $region44
      $region43: #{kqcon_forward.1} parent=35 // pred_region
        %p240 = scmp.lt.s32.totalorder %s13, 1
        %s241 = scalar_select %p240, %s13, 1
        %s242 = smul.addr %s241, 8
        %s243 = smul.addr %s242, 2
        %s244 = scalar_lea.vmem %s1, %s243
      $region44: #{kqcon_forward.1} parent=35 // pred_fallthru
        _
    $region36: #{kqcon_forward.1} parent=5 // pred_fallthru
      _
    %p245 = scmp.le.s32.totalorder 1, %s13
    %p246 = scmp.lt.s32.totalorder %s13, 3
    %p247 = pnand %p245, %p246
    %p248 = pneg %p247
    // Predicated region
    $region45: #{kqcon_forward.1} parent=5 // pred_check
      _
    $region46: #{kqcon_forward.1} parent=5 // pred_check_branch
      %250 = sbr.rel (%p247) target = $region48
    $region47: #{kqcon_forward.1} parent=5 // pred_region
      %s251 = ssub.s32 %s13, 1
      %p252 = scmp.lt.s32.totalorder %s18, 1
      %s253 = scalar_select %p252, %s18, 1
      %s254 = smul.addr %s253, 2
      %s255 = scalar_lea.vmem %s0, %s254
      %p256 = pneg %p39
      %p257 = pneg %p36
      %p258 = scmp.lt.s32.totalorder %s18, 1
      %s259 = scalar_select %p258, %s18, 1
      %s260 = smul.addr %s259, 8
      %s261 = smul.addr %s260, 2
      %s262 = scalar_lea.vmem %s1, %s261
      %p263 = pneg %p65
      %p264 = pneg %p62
      %p265 = pneg %p86
      %p266 = pneg %p83
      %p267 = pneg %p107
      %p268 = pneg %p104
      %p269 = pneg %p128
      %p270 = pneg %p125
      %p271 = pneg %p149
      %p272 = pneg %p146
      %p273 = pneg %p170
      %p274 = pneg %p167
      %p275 = pneg %p196
      %p276 = pneg %p193
      %p277 = scmp.lt.s32.totalorder %s18, 1
      %s278 = scalar_select %p277, %s18, 1
      %s279 = smul.addr %s278, 2
      %s280 = scalar_lea.vmem %s7, %s279
      %p281 = scmp.lt.s32.totalorder %s18, 1
      %s282 = scalar_select %p281, %s18, 1
      %s283 = smul.addr %s282, 2
      %s284 = scalar_lea.vmem %s0, %s283
      %p285 = scmp.lt.s32.totalorder %s18, 1
      %s286 = scalar_select %p285, %s18, 1
      %s287 = smul.addr %s286, 8
      %s288 = smul.addr %s287, 2
      %s289 = scalar_lea.vmem %s1, %s288
      %p290 = scmp.lt.s32.totalorder %s18, 1
      %s291 = scalar_select %p290, %s18, 1
      %s292 = smul.addr %s291, 2
      %s293 = scalar_lea.vmem %s7, %s292
      %v295 = vlaneseq
      %v296 = vand.u32 %v295, 127
      %v297 = vcvt.s32.f32 %v296
      %v298 = vmul.f32 %v297, 1.8
      %v299 = vadd.f32 %v298, 1.0
      %v300 = vmul.f32 %v299, 6.2831855
      %v301 = vld [vmem:[%s284] sm:$0x3]
      %303 = vset.pattern.permute.xlu0 0
      %304 = vperm.xlu0 %303, %v301
      %v305 = vpop.permute.xlu0 %304
      %v307 = vmul.f32 %v305, %v300
      %v308 = vand.u32 2147483647, %v307
      %vm309 = vcmp.le.f32.partialorder %v308, 0.7853982
      %vm310 = vcmp.lt.s32.totalorder %v307, 0
      %v311 = vand.u32 %v307, 2139095040
      %v312 = vshrl.u32 %v311, 23
      %v313 = vsub.s32 %v312, 127
      %v314 = vand.u32 2147483647, %v307
      %v315 = vand.u32 %v314, 8388607
      %v316 = vor.u32 %v315, 8388608
      %v317 = vsub.s32 0, %v316
      %v318 = vadd.s32 %v313, 1
      %vm319 = vcmp.gt.s32.totalorder %v318, 0
      %v320 = vsel %vm319, %v318, 0
      %v321 = vshrl.u32 %v320, 5
      %v322 = vand.u32 %v320, 31
      %v323 = vsub.s32 32, %v322
      %v324 = vshrl.u32 683565275, %v323
      %v325 = vshll.u32 683565275, %v322
      %v326 = vshrl.u32 2475754826, %v323
      %v327 = vor.u32 %v325, %v326
      %v328 = vshll.u32 2475754826, %v322
      %v329 = vshrl.u32 2131351028, %v323
      %v330 = vor.u32 %v328, %v329
      %v331 = vshll.u32 2131351028, %v322
      %v332 = vshrl.u32 2102212464, %v323
      %v333 = vor.u32 %v331, %v332
      %v334 = vshll.u32 2102212464, %v322
      %v335 = vshrl.u32 920167782, %v323
      %v336 = vor.u32 %v334, %v335
      %v337 = vshll.u32 920167782, %v322
      %v338 = vshrl.u32 1326507024, %v323
      %v339 = vor.u32 %v337, %v338
      %vm340 = vcmp.lt.s32.totalorder %v321, 1
      %vm341 = vcmp.lt.s32.totalorder %v321, 2
      %vm342 = vcmp.lt.s32.totalorder %v321, 3
      %vm343 = vcmp.lt.s32.totalorder %v321, 4
      %v344 = vsel %vm340, %v324, %v327
      %v345 = vsel %vm343, %v333, 2102212464
      %v346 = vsel %vm342, %v330, %v345
      %v347 = vsel %vm341, %v344, %v346
      %v348 = vsel %vm340, %v327, %v330
      %v349 = vsel %vm343, %v336, 920167782
      %v350 = vsel %vm342, %v333, %v349
      %v351 = vsel %vm341, %v348, %v350
      %v352 = vsel %vm340, %v330, %v333
      %v353 = vsel %vm343, %v339, 1326507024
      %v354 = vsel %vm342, %v336, %v353
      %v355 = vsel %vm341, %v352, %v354
      %v356 = vshll.u32 %v316, 8
      %v357 = vmul.u32.u64.compose %v356, %v355
      %v358 = vextract.low.u32 %v357
      %v359 = vextract.high.u32 %v357
      %v360 = vmul.u32.u64.compose %v356, %v351
      %v361 = vextract.low.u32 %v360
      %v362 = vextract.high.u32 %v360
      %v363 = vmul.u32 %v356, %v347
      %v364 = vadd.s32 %v359, %v361
      %vm365 = vc.u32 %v359, %v361
      %v366 = vadd.s32 %v362, 1
      %v367 = vsel %vm365, %v366, %v362
      %v368 = vadd.s32 %v363, %v367
      %v369 = vadd.s32 %v368, 536870912
      %v370 = vshrl.u32 %v369, 30
      %v371 = vshll.u32 %v370, 30
      %v372 = vsub.s32 %v368, %v371
      %vm373 = vcmp.lt.s32.totalorder %v372, 0
      %v374 = vsub.s32 0, %v372
      %v375 = vsel %vm373, %v374, %v372
      %v376 = vclz %v375
      %v377 = vsub.s32 %v376, 2
      %vm378 = vcmp.gt.s32.totalorder 0, %v377
      %v379 = vsel %vm378, 0, %v377
      %v380 = vsub.s32 32, %v379
      %v381 = vshll.u32 %v372, %v379
      %v382 = vshrl.u32 %v364, %v380
      %v383 = vor.u32 %v381, %v382
      %v384 = vsub.s32 4294967266, %v379
      %v385 = vadd.s32 %v384, 127
      %v386 = vshll.u32 %v385, 23
      %v387 = vor.u32 4788187, %v386
      %v388 = vand.u32 2147483647, %v387
      %v390 = vcvt.s32.f32 %v383
      %v391 = vmul.f32 %v390, %v388
      %v392 = vxor.u32 %v391, 2147483648
      %v393 = vsel %vm310, %v392, %v391
      %v394 = vsub.s32 4, %v370
      %v395 = vsel %vm310, %v394, %v370
      %v396 = vsel %vm309, %v307, %v393
      %v397 = vsel %vm309, 0, %v395
      %v398 = vcosq.f32.pop %v396
      %v399 = vsinq.f32.pop %v396
      %vm400 = vweird.f32 %v307
      %v401 = vadd.s32 %v397, 3
      %v402 = vand.u32 %v401, 3
      %vm403 = vcmp.lt.s32.totalorder %v402, 2
      %vm404 = vcmp.eq.s32.totalorder %v402, 0
      %v405 = vxor.u32 %v399, 2147483648
      %v406 = vsel %vm404, %v398, %v405
      %vm407 = vcmp.eq.s32.totalorder %v402, 2
      %v408 = vxor.u32 %v398, 2147483648
      %v409 = vsel %vm407, %v408, %v399
      %v410 = vsel %vm403, %v406, %v409
      %v411 = vsel %vm400, nan, %v410
      %vm412 = vcmask 41984
      %413 = vst.msk [vmem:[#allocation2] sm:$0x3] %vm412, %v411
      %v414 = vand.u32 2147483647, %v307
      %vm415 = vcmp.le.f32.partialorder %v414, 0.7853982
      %vm416 = vcmp.lt.s32.totalorder %v307, 0
      %v417 = vand.u32 %v307, 2139095040
      %v418 = vshrl.u32 %v417, 23
      %v419 = vsub.s32 %v418, 127
      %v420 = vand.u32 2147483647, %v307
      %v421 = vand.u32 %v420, 8388607
      %v422 = vor.u32 %v421, 8388608
      %v423 = vsub.s32 0, %v422
      %v424 = vadd.s32 %v419, 1
      %vm425 = vcmp.gt.s32.totalorder %v424, 0
      %v426 = vsel %vm425, %v424, 0
      %v427 = vshrl.u32 %v426, 5
      %v428 = vand.u32 %v426, 31
      %v429 = vsub.s32 32, %v428
      %v430 = vshrl.u32 683565275, %v429
      %v431 = vshll.u32 683565275, %v428
      %v432 = vshrl.u32 2475754826, %v429
      %v433 = vor.u32 %v431, %v432
      %v434 = vshll.u32 2475754826, %v428
      %v435 = vshrl.u32 2131351028, %v429
      %v436 = vor.u32 %v434, %v435
      %v437 = vshll.u32 2131351028, %v428
      %v438 = vshrl.u32 2102212464, %v429
      %v439 = vor.u32 %v437, %v438
      %v440 = vshll.u32 2102212464, %v428
      %v441 = vshrl.u32 920167782, %v429
      %v442 = vor.u32 %v440, %v441
      %v443 = vshll.u32 920167782, %v428
      %v444 = vshrl.u32 1326507024, %v429
      %v445 = vor.u32 %v443, %v444
      %vm446 = vcmp.lt.s32.totalorder %v427, 1
      %vm447 = vcmp.lt.s32.totalorder %v427, 2
      %vm448 = vcmp.lt.s32.totalorder %v427, 3
      %vm449 = vcmp.lt.s32.totalorder %v427, 4
      %v450 = vsel %vm446, %v430, %v433
      %v451 = vsel %vm449, %v439, 2102212464
      %v452 = vsel %vm448, %v436, %v451
      %v453 = vsel %vm447, %v450, %v452
      %v454 = vsel %vm446, %v433, %v436
      %v455 = vsel %vm449, %v442, 920167782
      %v456 = vsel %vm448, %v439, %v455
      %v457 = vsel %vm447, %v454, %v456
      %v458 = vsel %vm446, %v436, %v439
      %v459 = vsel %vm449, %v445, 1326507024
      %v460 = vsel %vm448, %v442, %v459
      %v461 = vsel %vm447, %v458, %v460
      %v462 = vshll.u32 %v422, 8
      %v463 = vmul.u32.u64.compose %v462, %v461
      %v464 = vextract.low.u32 %v463
      %v465 = vextract.high.u32 %v463
      %v466 = vmul.u32.u64.compose %v462, %v457
      %v467 = vextract.low.u32 %v466
      %v468 = vextract.high.u32 %v466
      %v469 = vmul.u32 %v462, %v453
      %v470 = vadd.s32 %v465, %v467
      %vm471 = vc.u32 %v465, %v467
      %v472 = vadd.s32 %v468, 1
      %v473 = vsel %vm471, %v472, %v468
      %v474 = vadd.s32 %v469, %v473
      %v475 = vadd.s32 %v474, 536870912
      %v476 = vshrl.u32 %v475, 30
      %v477 = vshll.u32 %v476, 30
      %v478 = vsub.s32 %v474, %v477
      %vm479 = vcmp.lt.s32.totalorder %v478, 0
      %v480 = vsub.s32 0, %v478
      %v481 = vsel %vm479, %v480, %v478
      %v482 = vclz %v481
      %v483 = vsub.s32 %v482, 2
      %vm484 = vcmp.gt.s32.totalorder 0, %v483
      %v485 = vsel %vm484, 0, %v483
      %v486 = vsub.s32 32, %v485
      %v487 = vshll.u32 %v478, %v485
      %v488 = vshrl.u32 %v470, %v486
      %v489 = vor.u32 %v487, %v488
      %v490 = vsub.s32 4294967266, %v485
      %v491 = vadd.s32 %v490, 127
      %v492 = vshll.u32 %v491, 23
      %v493 = vor.u32 4788187, %v492
      %v494 = vand.u32 2147483647, %v493
      %v496 = vcvt.s32.f32 %v489
      %v497 = vmul.f32 %v496, %v494
      %v498 = vxor.u32 %v497, 2147483648
      %v499 = vsel %vm416, %v498, %v497
      %v500 = vsub.s32 4, %v476
      %v501 = vsel %vm416, %v500, %v476
      %v502 = vsel %vm415, %v307, %v499
      %v503 = vsel %vm415, 0, %v501
      %v504 = vcosq.f32.pop %v502
      %v505 = vsinq.f32.pop %v502
      %vm506 = vweird.f32 %v307
      %v507 = vand.u32 %v503, 3
      %vm508 = vcmp.lt.s32.totalorder %v507, 2
      %vm509 = vcmp.eq.s32.totalorder %v507, 0
      %v510 = vxor.u32 %v505, 2147483648
      %v511 = vsel %vm509, %v504, %v510
      %vm512 = vcmp.eq.s32.totalorder %v507, 2
      %v513 = vxor.u32 %v504, 2147483648
      %v514 = vsel %vm512, %v513, %v505
      %v515 = vsel %vm508, %v511, %v514
      %v516 = vsel %vm506, nan, %v515
      %518 = vrot.lane.b32.xlu0 %v516, 6
      %v519 = vpop.permute.xlu0 %518
      %vm521 = vcmask 91184
      %522 = vst.msk [vmem:[#allocation2] sm:$0x3] %vm521, %v519
      %v523 = vld [vmem:[%s284] sm:$0x3]
      %525 = vset.pattern.permute.xlu0 1
      %526 = vperm.xlu0 %525, %v523
      %v527 = vpop.permute.xlu0 %526
      %v529 = vmul.f32 %v527, %v300
      %v530 = vand.u32 2147483647, %v529
      %vm531 = vcmp.le.f32.partialorder %v530, 0.7853982
      %vm532 = vcmp.lt.s32.totalorder %v529, 0
      %v533 = vand.u32 %v529, 2139095040
      %v534 = vshrl.u32 %v533, 23
      %v535 = vsub.s32 %v534, 127
      %v536 = vand.u32 2147483647, %v529
      %v537 = vand.u32 %v536, 8388607
      %v538 = vor.u32 %v537, 8388608
      %v539 = vsub.s32 0, %v538
      %v540 = vadd.s32 %v535, 1
      %vm541 = vcmp.gt.s32.totalorder %v540, 0
      %v542 = vsel %vm541, %v540, 0
      %v543 = vshrl.u32 %v542, 5
      %v544 = vand.u32 %v542, 31
      %v545 = vsub.s32 32, %v544
      %v546 = vshrl.u32 683565275, %v545
      %v547 = vshll.u32 683565275, %v544
      %v548 = vshrl.u32 2475754826, %v545
      %v549 = vor.u32 %v547, %v548
      %v550 = vshll.u32 2475754826, %v544
      %v551 = vshrl.u32 2131351028, %v545
      %v552 = vor.u32 %v550, %v551
      %v553 = vshll.u32 2131351028, %v544
      %v554 = vshrl.u32 2102212464, %v545
      %v555 = vor.u32 %v553, %v554
      %v556 = vshll.u32 2102212464, %v544
      %v557 = vshrl.u32 920167782, %v545
      %v558 = vor.u32 %v556, %v557
      %v559 = vshll.u32 920167782, %v544
      %v560 = vshrl.u32 1326507024, %v545
      %v561 = vor.u32 %v559, %v560
      %vm562 = vcmp.lt.s32.totalorder %v543, 1
      %vm563 = vcmp.lt.s32.totalorder %v543, 2
      %vm564 = vcmp.lt.s32.totalorder %v543, 3
      %vm565 = vcmp.lt.s32.totalorder %v543, 4
      %v566 = vsel %vm562, %v546, %v549
      %v567 = vsel %vm565, %v555, 2102212464
      %v568 = vsel %vm564, %v552, %v567
      %v569 = vsel %vm563, %v566, %v568
      %v570 = vsel %vm562, %v549, %v552
      %v571 = vsel %vm565, %v558, 920167782
      %v572 = vsel %vm564, %v555, %v571
      %v573 = vsel %vm563, %v570, %v572
      %v574 = vsel %vm562, %v552, %v555
      %v575 = vsel %vm565, %v561, 1326507024
      %v576 = vsel %vm564, %v558, %v575
      %v577 = vsel %vm563, %v574, %v576
      %v578 = vshll.u32 %v538, 8
      %v579 = vmul.u32.u64.compose %v578, %v577
      %v580 = vextract.low.u32 %v579
      %v581 = vextract.high.u32 %v579
      %v582 = vmul.u32.u64.compose %v578, %v573
      %v583 = vextract.low.u32 %v582
      %v584 = vextract.high.u32 %v582
      %v585 = vmul.u32 %v578, %v569
      %v586 = vadd.s32 %v581, %v583
      %vm587 = vc.u32 %v581, %v583
      %v588 = vadd.s32 %v584, 1
      %v589 = vsel %vm587, %v588, %v584
      %v590 = vadd.s32 %v585, %v589
      %v591 = vadd.s32 %v590, 536870912
      %v592 = vshrl.u32 %v591, 30
      %v593 = vshll.u32 %v592, 30
      %v594 = vsub.s32 %v590, %v593
      %vm595 = vcmp.lt.s32.totalorder %v594, 0
      %v596 = vsub.s32 0, %v594
      %v597 = vsel %vm595, %v596, %v594
      %v598 = vclz %v597
      %v599 = vsub.s32 %v598, 2
      %vm600 = vcmp.gt.s32.totalorder 0, %v599
      %v601 = vsel %vm600, 0, %v599
      %v602 = vsub.s32 32, %v601
      %v603 = vshll.u32 %v594, %v601
      %v604 = vshrl.u32 %v586, %v602
      %v605 = vor.u32 %v603, %v604
      %v606 = vsub.s32 4294967266, %v601
      %v607 = vadd.s32 %v606, 127
      %v608 = vshll.u32 %v607, 23
      %v609 = vor.u32 4788187, %v608
      %v610 = vand.u32 2147483647, %v609
      %v612 = vcvt.s32.f32 %v605
      %v613 = vmul.f32 %v612, %v610
      %v614 = vxor.u32 %v613, 2147483648
      %v615 = vsel %vm532, %v614, %v613
      %v616 = vsub.s32 4, %v592
      %v617 = vsel %vm532, %v616, %v592
      %v618 = vsel %vm531, %v529, %v615
      %v619 = vsel %vm531, 0, %v617
      %v620 = vcosq.f32.pop %v618
      %v621 = vsinq.f32.pop %v618
      %vm622 = vweird.f32 %v529
      %v623 = vadd.s32 %v619, 3
      %v624 = vand.u32 %v623, 3
      %vm625 = vcmp.lt.s32.totalorder %v624, 2
      %vm626 = vcmp.eq.s32.totalorder %v624, 0
      %v627 = vxor.u32 %v621, 2147483648
      %v628 = vsel %vm626, %v620, %v627
      %vm629 = vcmp.eq.s32.totalorder %v624, 2
      %v630 = vxor.u32 %v620, 2147483648
      %v631 = vsel %vm629, %v630, %v621
      %v632 = vsel %vm625, %v628, %v631
      %v633 = vsel %vm622, nan, %v632
      %635 = vrot.lane.b32.xlu0 %v633, 12
      %v636 = vpop.permute.xlu0 %635
      %vm638 = vcmask 140384
      %639 = vst.msk [vmem:[#allocation2] sm:$0x3] %vm638, %v636
      %v640 = vand.u32 2147483647, %v529
      %vm641 = vcmp.le.f32.partialorder %v640, 0.7853982
      %vm642 = vcmp.lt.s32.totalorder %v529, 0
      %v643 = vand.u32 %v529, 2139095040
      %v644 = vshrl.u32 %v643, 23
      %v645 = vsub.s32 %v644, 127
      %v646 = vand.u32 2147483647, %v529
      %v647 = vand.u32 %v646, 8388607
      %v648 = vor.u32 %v647, 8388608
      %v649 = vsub.s32 0, %v648
      %v650 = vadd.s32 %v645, 1
      %vm651 = vcmp.gt.s32.totalorder %v650, 0
      %v652 = vsel %vm651, %v650, 0
      %v653 = vshrl.u32 %v652, 5
      %v654 = vand.u32 %v652, 31
      %v655 = vsub.s32 32, %v654
      %v656 = vshrl.u32 683565275, %v655
      %v657 = vshll.u32 683565275, %v654
      %v658 = vshrl.u32 2475754826, %v655
      %v659 = vor.u32 %v657, %v658
      %v660 = vshll.u32 2475754826, %v654
      %v661 = vshrl.u32 2131351028, %v655
      %v662 = vor.u32 %v660, %v661
      %v663 = vshll.u32 2131351028, %v654
      %v664 = vshrl.u32 2102212464, %v655
      %v665 = vor.u32 %v663, %v664
      %v666 = vshll.u32 2102212464, %v654
      %v667 = vshrl.u32 920167782, %v655
      %v668 = vor.u32 %v666, %v667
      %v669 = vshll.u32 920167782, %v654
      %v670 = vshrl.u32 1326507024, %v655
      %v671 = vor.u32 %v669, %v670
      %vm672 = vcmp.lt.s32.totalorder %v653, 1
      %vm673 = vcmp.lt.s32.totalorder %v653, 2
      %vm674 = vcmp.lt.s32.totalorder %v653, 3
      %vm675 = vcmp.lt.s32.totalorder %v653, 4
      %v676 = vsel %vm672, %v656, %v659
      %v677 = vsel %vm675, %v665, 2102212464
      %v678 = vsel %vm674, %v662, %v677
      %v679 = vsel %vm673, %v676, %v678
      %v680 = vsel %vm672, %v659, %v662
      %v681 = vsel %vm675, %v668, 920167782
      %v682 = vsel %vm674, %v665, %v681
      %v683 = vsel %vm673, %v680, %v682
      %v684 = vsel %vm672, %v662, %v665
      %v685 = vsel %vm675, %v671, 1326507024
      %v686 = vsel %vm674, %v668, %v685
      %v687 = vsel %vm673, %v684, %v686
      %v688 = vshll.u32 %v648, 8
      %v689 = vmul.u32.u64.compose %v688, %v687
      %v690 = vextract.low.u32 %v689
      %v691 = vextract.high.u32 %v689
      %v692 = vmul.u32.u64.compose %v688, %v683
      %v693 = vextract.low.u32 %v692
      %v694 = vextract.high.u32 %v692
      %v695 = vmul.u32 %v688, %v679
      %v696 = vadd.s32 %v691, %v693
      %vm697 = vc.u32 %v691, %v693
      %v698 = vadd.s32 %v694, 1
      %v699 = vsel %vm697, %v698, %v694
      %v700 = vadd.s32 %v695, %v699
      %v701 = vadd.s32 %v700, 536870912
      %v702 = vshrl.u32 %v701, 30
      %v703 = vshll.u32 %v702, 30
      %v704 = vsub.s32 %v700, %v703
      %vm705 = vcmp.lt.s32.totalorder %v704, 0
      %v706 = vsub.s32 0, %v704
      %v707 = vsel %vm705, %v706, %v704
      %v708 = vclz %v707
      %v709 = vsub.s32 %v708, 2
      %vm710 = vcmp.gt.s32.totalorder 0, %v709
      %v711 = vsel %vm710, 0, %v709
      %v712 = vsub.s32 32, %v711
      %v713 = vshll.u32 %v704, %v711
      %v714 = vshrl.u32 %v696, %v712
      %v715 = vor.u32 %v713, %v714
      %v716 = vsub.s32 4294967266, %v711
      %v717 = vadd.s32 %v716, 127
      %v718 = vshll.u32 %v717, 23
      %v719 = vor.u32 4788187, %v718
      %v720 = vand.u32 2147483647, %v719
      %v722 = vcvt.s32.f32 %v715
      %v723 = vmul.f32 %v722, %v720
      %v724 = vxor.u32 %v723, 2147483648
      %v725 = vsel %vm642, %v724, %v723
      %v726 = vsub.s32 4, %v702
      %v727 = vsel %vm642, %v726, %v702
      %v728 = vsel %vm641, %v529, %v725
      %v729 = vsel %vm641, 0, %v727
      %v730 = vcosq.f32.pop %v728
      %v731 = vsinq.f32.pop %v728
      %vm732 = vweird.f32 %v529
      %v733 = vand.u32 %v729, 3
      %vm734 = vcmp.lt.s32.totalorder %v733, 2
      %vm735 = vcmp.eq.s32.totalorder %v733, 0
      %v736 = vxor.u32 %v731, 2147483648
      %v737 = vsel %vm735, %v730, %v736
      %vm738 = vcmp.eq.s32.totalorder %v733, 2
      %v739 = vxor.u32 %v730, 2147483648
      %v740 = vsel %vm738, %v739, %v731
      %v741 = vsel %vm734, %v737, %v740
      %v742 = vsel %vm732, nan, %v741
      %744 = vrot.lane.b32.xlu0 %v742, 18
      %v745 = vpop.permute.xlu0 %744
      %vm747 = vcmask 189584
      %748 = vst.msk [vmem:[#allocation2] sm:$0x3] %vm747, %v745
      %v749 = vld [vmem:[%s284] sm:$0x3]
      %751 = vset.pattern.permute.xlu0 2
      %752 = vperm.xlu0 %751, %v749
      %v753 = vpop.permute.xlu0 %752
      %v755 = vmul.f32 %v753, %v300
      %v756 = vand.u32 2147483647, %v755
      %vm757 = vcmp.le.f32.partialorder %v756, 0.7853982
      %vm758 = vcmp.lt.s32.totalorder %v755, 0
      %v759 = vand.u32 %v755, 2139095040
      %v760 = vshrl.u32 %v759, 23
      %v761 = vsub.s32 %v760, 127
      %v762 = vand.u32 2147483647, %v755
      %v763 = vand.u32 %v762, 8388607
      %v764 = vor.u32 %v763, 8388608
      %v765 = vsub.s32 0, %v764
      %v766 = vadd.s32 %v761, 1
      %vm767 = vcmp.gt.s32.totalorder %v766, 0
      %v768 = vsel %vm767, %v766, 0
      %v769 = vshrl.u32 %v768, 5
      %v770 = vand.u32 %v768, 31
      %v771 = vsub.s32 32, %v770
      %v772 = vshrl.u32 683565275, %v771
      %v773 = vshll.u32 683565275, %v770
      %v774 = vshrl.u32 2475754826, %v771
      %v775 = vor.u32 %v773, %v774
      %v776 = vshll.u32 2475754826, %v770
      %v777 = vshrl.u32 2131351028, %v771
      %v778 = vor.u32 %v776, %v777
      %v779 = vshll.u32 2131351028, %v770
      %v780 = vshrl.u32 2102212464, %v771
      %v781 = vor.u32 %v779, %v780
      %v782 = vshll.u32 2102212464, %v770
      %v783 = vshrl.u32 920167782, %v771
      %v784 = vor.u32 %v782, %v783
      %v785 = vshll.u32 920167782, %v770
      %v786 = vshrl.u32 1326507024, %v771
      %v787 = vor.u32 %v785, %v786
      %vm788 = vcmp.lt.s32.totalorder %v769, 1
      %vm789 = vcmp.lt.s32.totalorder %v769, 2
      %vm790 = vcmp.lt.s32.totalorder %v769, 3
      %vm791 = vcmp.lt.s32.totalorder %v769, 4
      %v792 = vsel %vm788, %v772, %v775
      %v793 = vsel %vm791, %v781, 2102212464
      %v794 = vsel %vm790, %v778, %v793
      %v795 = vsel %vm789, %v792, %v794
      %v796 = vsel %vm788, %v775, %v778
      %v797 = vsel %vm791, %v784, 920167782
      %v798 = vsel %vm790, %v781, %v797
      %v799 = vsel %vm789, %v796, %v798
      %v800 = vsel %vm788, %v778, %v781
      %v801 = vsel %vm791, %v787, 1326507024
      %v802 = vsel %vm790, %v784, %v801
      %v803 = vsel %vm789, %v800, %v802
      %v804 = vshll.u32 %v764, 8
      %v805 = vmul.u32.u64.compose %v804, %v803
      %v806 = vextract.low.u32 %v805
      %v807 = vextract.high.u32 %v805
      %v808 = vmul.u32.u64.compose %v804, %v799
      %v809 = vextract.low.u32 %v808
      %v810 = vextract.high.u32 %v808
      %v811 = vmul.u32 %v804, %v795
      %v812 = vadd.s32 %v807, %v809
      %vm813 = vc.u32 %v807, %v809
      %v814 = vadd.s32 %v810, 1
      %v815 = vsel %vm813, %v814, %v810
      %v816 = vadd.s32 %v811, %v815
      %v817 = vadd.s32 %v816, 536870912
      %v818 = vshrl.u32 %v817, 30
      %v819 = vshll.u32 %v818, 30
      %v820 = vsub.s32 %v816, %v819
      %vm821 = vcmp.lt.s32.totalorder %v820, 0
      %v822 = vsub.s32 0, %v820
      %v823 = vsel %vm821, %v822, %v820
      %v824 = vclz %v823
      %v825 = vsub.s32 %v824, 2
      %vm826 = vcmp.gt.s32.totalorder 0, %v825
      %v827 = vsel %vm826, 0, %v825
      %v828 = vsub.s32 32, %v827
      %v829 = vshll.u32 %v820, %v827
      %v830 = vshrl.u32 %v812, %v828
      %v831 = vor.u32 %v829, %v830
      %v832 = vsub.s32 4294967266, %v827
      %v833 = vadd.s32 %v832, 127
      %v834 = vshll.u32 %v833, 23
      %v835 = vor.u32 4788187, %v834
      %v836 = vand.u32 2147483647, %v835
      %v838 = vcvt.s32.f32 %v831
      %v839 = vmul.f32 %v838, %v836
      %v840 = vxor.u32 %v839, 2147483648
      %v841 = vsel %vm758, %v840, %v839
      %v842 = vsub.s32 4, %v818
      %v843 = vsel %vm758, %v842, %v818
      %v844 = vsel %vm757, %v755, %v841
      %v845 = vsel %vm757, 0, %v843
      %v846 = vcosq.f32.pop %v844
      %v847 = vsinq.f32.pop %v844
      %vm848 = vweird.f32 %v755
      %v849 = vadd.s32 %v845, 3
      %v850 = vand.u32 %v849, 3
      %vm851 = vcmp.lt.s32.totalorder %v850, 2
      %vm852 = vcmp.eq.s32.totalorder %v850, 0
      %v853 = vxor.u32 %v847, 2147483648
      %v854 = vsel %vm852, %v846, %v853
      %vm855 = vcmp.eq.s32.totalorder %v850, 2
      %v856 = vxor.u32 %v846, 2147483648
      %v857 = vsel %vm855, %v856, %v847
      %v858 = vsel %vm851, %v854, %v857
      %v859 = vsel %vm848, nan, %v858
      %861 = vrot.lane.b32.xlu0 %v859, 24
      %v862 = vpop.permute.xlu0 %861
      %vm864 = vcmask 238784
      %865 = vst.msk [vmem:[#allocation2] sm:$0x3] %vm864, %v862
      %v866 = vand.u32 2147483647, %v755
      %vm867 = vcmp.le.f32.partialorder %v866, 0.7853982
      %vm868 = vcmp.lt.s32.totalorder %v755, 0
      %v869 = vand.u32 %v755, 2139095040
      %v870 = vshrl.u32 %v869, 23
      %v871 = vsub.s32 %v870, 127
      %v872 = vand.u32 2147483647, %v755
      %v873 = vand.u32 %v872, 8388607
      %v874 = vor.u32 %v873, 8388608
      %v875 = vsub.s32 0, %v874
      %v876 = vadd.s32 %v871, 1
      %vm877 = vcmp.gt.s32.totalorder %v876, 0
      %v878 = vsel %vm877, %v876, 0
      %v879 = vshrl.u32 %v878, 5
      %v880 = vand.u32 %v878, 31
      %v881 = vsub.s32 32, %v880
      %v882 = vshrl.u32 683565275, %v881
      %v883 = vshll.u32 683565275, %v880
      %v884 = vshrl.u32 2475754826, %v881
      %v885 = vor.u32 %v883, %v884
      %v886 = vshll.u32 2475754826, %v880
      %v887 = vshrl.u32 2131351028, %v881
      %v888 = vor.u32 %v886, %v887
      %v889 = vshll.u32 2131351028, %v880
      %v890 = vshrl.u32 2102212464, %v881
      %v891 = vor.u32 %v889, %v890
      %v892 = vshll.u32 2102212464, %v880
      %v893 = vshrl.u32 920167782, %v881
      %v894 = vor.u32 %v892, %v893
      %v895 = vshll.u32 920167782, %v880
      %v896 = vshrl.u32 1326507024, %v881
      %v897 = vor.u32 %v895, %v896
      %vm898 = vcmp.lt.s32.totalorder %v879, 1
      %vm899 = vcmp.lt.s32.totalorder %v879, 2
      %vm900 = vcmp.lt.s32.totalorder %v879, 3
      %vm901 = vcmp.lt.s32.totalorder %v879, 4
      %v902 = vsel %vm898, %v882, %v885
      %v903 = vsel %vm901, %v891, 2102212464
      %v904 = vsel %vm900, %v888, %v903
      %v905 = vsel %vm899, %v902, %v904
      %v906 = vsel %vm898, %v885, %v888
      %v907 = vsel %vm901, %v894, 920167782
      %v908 = vsel %vm900, %v891, %v907
      %v909 = vsel %vm899, %v906, %v908
      %v910 = vsel %vm898, %v888, %v891
      %v911 = vsel %vm901, %v897, 1326507024
      %v912 = vsel %vm900, %v894, %v911
      %v913 = vsel %vm899, %v910, %v912
      %v914 = vshll.u32 %v874, 8
      %v915 = vmul.u32.u64.compose %v914, %v913
      %v916 = vextract.low.u32 %v915
      %v917 = vextract.high.u32 %v915
      %v918 = vmul.u32.u64.compose %v914, %v909
      %v919 = vextract.low.u32 %v918
      %v920 = vextract.high.u32 %v918
      %v921 = vmul.u32 %v914, %v905
      %v922 = vadd.s32 %v917, %v919
      %vm923 = vc.u32 %v917, %v919
      %v924 = vadd.s32 %v920, 1
      %v925 = vsel %vm923, %v924, %v920
      %v926 = vadd.s32 %v921, %v925
      %v927 = vadd.s32 %v926, 536870912
      %v928 = vshrl.u32 %v927, 30
      %v929 = vshll.u32 %v928, 30
      %v930 = vsub.s32 %v926, %v929
      %vm931 = vcmp.lt.s32.totalorder %v930, 0
      %v932 = vsub.s32 0, %v930
      %v933 = vsel %vm931, %v932, %v930
      %v934 = vclz %v933
      %v935 = vsub.s32 %v934, 2
      %vm936 = vcmp.gt.s32.totalorder 0, %v935
      %v937 = vsel %vm936, 0, %v935
      %v938 = vsub.s32 32, %v937
      %v939 = vshll.u32 %v930, %v937
      %v940 = vshrl.u32 %v922, %v938
      %v941 = vor.u32 %v939, %v940
      %v942 = vsub.s32 4294967266, %v937
      %v943 = vadd.s32 %v942, 127
      %v944 = vshll.u32 %v943, 23
      %v945 = vor.u32 4788187, %v944
      %v946 = vand.u32 2147483647, %v945
      %v948 = vcvt.s32.f32 %v941
      %v949 = vmul.f32 %v948, %v946
      %v950 = vxor.u32 %v949, 2147483648
      %v951 = vsel %vm868, %v950, %v949
      %v952 = vsub.s32 4, %v928
      %v953 = vsel %vm868, %v952, %v928
      %v954 = vsel %vm867, %v755, %v951
      %v955 = vsel %vm867, 0, %v953
      %v956 = vcosq.f32.pop %v954
      %v957 = vsinq.f32.pop %v954
      %vm958 = vweird.f32 %v755
      %v959 = vand.u32 %v955, 3
      %vm960 = vcmp.lt.s32.totalorder %v959, 2
      %vm961 = vcmp.eq.s32.totalorder %v959, 0
      %v962 = vxor.u32 %v957, 2147483648
      %v963 = vsel %vm961, %v956, %v962
      %vm964 = vcmp.eq.s32.totalorder %v959, 2
      %v965 = vxor.u32 %v956, 2147483648
      %v966 = vsel %vm964, %v965, %v957
      %v967 = vsel %vm960, %v963, %v966
      %v968 = vsel %vm958, nan, %v967
      %970 = vrot.lane.b32.xlu0 %v968, 30
      %v971 = vpop.permute.xlu0 %970
      %vm973 = vcmask 287984
      %974 = vst.msk [vmem:[#allocation2] sm:$0x3] %vm973, %v971
      %v975 = vld [vmem:[%s284] sm:$0x3]
      %977 = vset.pattern.permute.xlu0 3
      %978 = vperm.xlu0 %977, %v975
      %v979 = vpop.permute.xlu0 %978
      %v981 = vmul.f32 %v979, %v300
      %v982 = vand.u32 2147483647, %v981
      %vm983 = vcmp.le.f32.partialorder %v982, 0.7853982
      %vm984 = vcmp.lt.s32.totalorder %v981, 0
      %v985 = vand.u32 %v981, 2139095040
      %v986 = vshrl.u32 %v985, 23
      %v987 = vsub.s32 %v986, 127
      %v988 = vand.u32 2147483647, %v981
      %v989 = vand.u32 %v988, 8388607
      %v990 = vor.u32 %v989, 8388608
      %v991 = vsub.s32 0, %v990
      %v992 = vadd.s32 %v987, 1
      %vm993 = vcmp.gt.s32.totalorder %v992, 0
      %v994 = vsel %vm993, %v992, 0
      %v995 = vshrl.u32 %v994, 5
      %v996 = vand.u32 %v994, 31
      %v997 = vsub.s32 32, %v996
      %v998 = vshrl.u32 683565275, %v997
      %v999 = vshll.u32 683565275, %v996
      %v1000 = vshrl.u32 2475754826, %v997
      %v1001 = vor.u32 %v999, %v1000
      %v1002 = vshll.u32 2475754826, %v996
      %v1003 = vshrl.u32 2131351028, %v997
      %v1004 = vor.u32 %v1002, %v1003
      %v1005 = vshll.u32 2131351028, %v996
      %v1006 = vshrl.u32 2102212464, %v997
      %v1007 = vor.u32 %v1005, %v1006
      %v1008 = vshll.u32 2102212464, %v996
      %v1009 = vshrl.u32 920167782, %v997
      %v1010 = vor.u32 %v1008, %v1009
      %v1011 = vshll.u32 920167782, %v996
      %v1012 = vshrl.u32 1326507024, %v997
      %v1013 = vor.u32 %v1011, %v1012
      %vm1014 = vcmp.lt.s32.totalorder %v995, 1
      %vm1015 = vcmp.lt.s32.totalorder %v995, 2
      %vm1016 = vcmp.lt.s32.totalorder %v995, 3
      %vm1017 = vcmp.lt.s32.totalorder %v995, 4
      %v1018 = vsel %vm1014, %v998, %v1001
      %v1019 = vsel %vm1017, %v1007, 2102212464
      %v1020 = vsel %vm1016, %v1004, %v1019
      %v1021 = vsel %vm1015, %v1018, %v1020
      %v1022 = vsel %vm1014, %v1001, %v1004
      %v1023 = vsel %vm1017, %v1010, 920167782
      %v1024 = vsel %vm1016, %v1007, %v1023
      %v1025 = vsel %vm1015, %v1022, %v1024
      %v1026 = vsel %vm1014, %v1004, %v1007
      %v1027 = vsel %vm1017, %v1013, 1326507024
      %v1028 = vsel %vm1016, %v1010, %v1027
      %v1029 = vsel %vm1015, %v1026, %v1028
      %v1030 = vshll.u32 %v990, 8
      %v1031 = vmul.u32.u64.compose %v1030, %v1029
      %v1032 = vextract.low.u32 %v1031
      %v1033 = vextract.high.u32 %v1031
      %v1034 = vmul.u32.u64.compose %v1030, %v1025
      %v1035 = vextract.low.u32 %v1034
      %v1036 = vextract.high.u32 %v1034
      %v1037 = vmul.u32 %v1030, %v1021
      %v1038 = vadd.s32 %v1033, %v1035
      %vm1039 = vc.u32 %v1033, %v1035
      %v1040 = vadd.s32 %v1036, 1
      %v1041 = vsel %vm1039, %v1040, %v1036
      %v1042 = vadd.s32 %v1037, %v1041
      %v1043 = vadd.s32 %v1042, 536870912
      %v1044 = vshrl.u32 %v1043, 30
      %v1045 = vshll.u32 %v1044, 30
      %v1046 = vsub.s32 %v1042, %v1045
      %vm1047 = vcmp.lt.s32.totalorder %v1046, 0
      %v1048 = vsub.s32 0, %v1046
      %v1049 = vsel %vm1047, %v1048, %v1046
      %v1050 = vclz %v1049
      %v1051 = vsub.s32 %v1050, 2
      %vm1052 = vcmp.gt.s32.totalorder 0, %v1051
      %v1053 = vsel %vm1052, 0, %v1051
      %v1054 = vsub.s32 32, %v1053
      %v1055 = vshll.u32 %v1046, %v1053
      %v1056 = vshrl.u32 %v1038, %v1054
      %v1057 = vor.u32 %v1055, %v1056
      %v1058 = vsub.s32 4294967266, %v1053
      %v1059 = vadd.s32 %v1058, 127
      %v1060 = vshll.u32 %v1059, 23
      %v1061 = vor.u32 4788187, %v1060
      %v1062 = vand.u32 2147483647, %v1061
      %v1064 = vcvt.s32.f32 %v1057
      %v1065 = vmul.f32 %v1064, %v1062
      %v1066 = vxor.u32 %v1065, 2147483648
      %v1067 = vsel %vm984, %v1066, %v1065
      %v1068 = vsub.s32 4, %v1044
      %v1069 = vsel %vm984, %v1068, %v1044
      %v1070 = vsel %vm983, %v981, %v1067
      %v1071 = vsel %vm983, 0, %v1069
      %v1072 = vcosq.f32.pop %v1070
      %v1073 = vsinq.f32.pop %v1070
      %vm1074 = vweird.f32 %v981
      %v1075 = vadd.s32 %v1071, 3
      %v1076 = vand.u32 %v1075, 3
      %vm1077 = vcmp.lt.s32.totalorder %v1076, 2
      %vm1078 = vcmp.eq.s32.totalorder %v1076, 0
      %v1079 = vxor.u32 %v1073, 2147483648
      %v1080 = vsel %vm1078, %v1072, %v1079
      %vm1081 = vcmp.eq.s32.totalorder %v1076, 2
      %v1082 = vxor.u32 %v1072, 2147483648
      %v1083 = vsel %vm1081, %v1082, %v1073
      %v1084 = vsel %vm1077, %v1080, %v1083
      %v1085 = vsel %vm1074, nan, %v1084
      %1087 = vrot.lane.b32.xlu0 %v1085, 36
      %v1088 = vpop.permute.xlu0 %1087
      %vm1090 = vcmask 337184
      %1091 = vst.msk [vmem:[#allocation2] sm:$0x3] %vm1090, %v1088
      %v1092 = vand.u32 2147483647, %v981
      %vm1093 = vcmp.le.f32.partialorder %v1092, 0.7853982
      %vm1094 = vcmp.lt.s32.totalorder %v981, 0
      %v1095 = vand.u32 %v981, 2139095040
      %v1096 = vshrl.u32 %v1095, 23
      %v1097 = vsub.s32 %v1096, 127
      %v1098 = vand.u32 2147483647, %v981
      %v1099 = vand.u32 %v1098, 8388607
      %v1100 = vor.u32 %v1099, 8388608
      %v1101 = vsub.s32 0, %v1100
      %v1102 = vadd.s32 %v1097, 1
      %vm1103 = vcmp.gt.s32.totalorder %v1102, 0
      %v1104 = vsel %vm1103, %v1102, 0
      %v1105 = vshrl.u32 %v1104, 5
      %v1106 = vand.u32 %v1104, 31
      %v1107 = vsub.s32 32, %v1106
      %v1108 = vshrl.u32 683565275, %v1107
      %v1109 = vshll.u32 683565275, %v1106
      %v1110 = vshrl.u32 2475754826, %v1107
      %v1111 = vor.u32 %v1109, %v1110
      %v1112 = vshll.u32 2475754826, %v1106
      %v1113 = vshrl.u32 2131351028, %v1107
      %v1114 = vor.u32 %v1112, %v1113
      %v1115 = vshll.u32 2131351028, %v1106
      %v1116 = vshrl.u32 2102212464, %v1107
      %v1117 = vor.u32 %v1115, %v1116
      %v1118 = vshll.u32 2102212464, %v1106
      %v1119 = vshrl.u32 920167782, %v1107
      %v1120 = vor.u32 %v1118, %v1119
      %v1121 = vshll.u32 920167782, %v1106
      %v1122 = vshrl.u32 1326507024, %v1107
      %v1123 = vor.u32 %v1121, %v1122
      %vm1124 = vcmp.lt.s32.totalorder %v1105, 1
      %vm1125 = vcmp.lt.s32.totalorder %v1105, 2
      %vm1126 = vcmp.lt.s32.totalorder %v1105, 3
      %vm1127 = vcmp.lt.s32.totalorder %v1105, 4
      %v1128 = vsel %vm1124, %v1108, %v1111
      %v1129 = vsel %vm1127, %v1117, 2102212464
      %v1130 = vsel %vm1126, %v1114, %v1129
      %v1131 = vsel %vm1125, %v1128, %v1130
      %v1132 = vsel %vm1124, %v1111, %v1114
      %v1133 = vsel %vm1127, %v1120, 920167782
      %v1134 = vsel %vm1126, %v1117, %v1133
      %v1135 = vsel %vm1125, %v1132, %v1134
      %v1136 = vsel %vm1124, %v1114, %v1117
      %v1137 = vsel %vm1127, %v1123, 1326507024
      %v1138 = vsel %vm1126, %v1120, %v1137
      %v1139 = vsel %vm1125, %v1136, %v1138
      %v1140 = vshll.u32 %v1100, 8
      %v1141 = vmul.u32.u64.compose %v1140, %v1139
      %v1142 = vextract.low.u32 %v1141
      %v1143 = vextract.high.u32 %v1141
      %v1144 = vmul.u32.u64.compose %v1140, %v1135
      %v1145 = vextract.low.u32 %v1144
      %v1146 = vextract.high.u32 %v1144
      %v1147 = vmul.u32 %v1140, %v1131
      %v1148 = vadd.s32 %v1143, %v1145
      %vm1149 = vc.u32 %v1143, %v1145
      %v1150 = vadd.s32 %v1146, 1
      %v1151 = vsel %vm1149, %v1150, %v1146
      %v1152 = vadd.s32 %v1147, %v1151
      %v1153 = vadd.s32 %v1152, 536870912
      %v1154 = vshrl.u32 %v1153, 30
      %v1155 = vshll.u32 %v1154, 30
      %v1156 = vsub.s32 %v1152, %v1155
      %vm1157 = vcmp.lt.s32.totalorder %v1156, 0
      %v1158 = vsub.s32 0, %v1156
      %v1159 = vsel %vm1157, %v1158, %v1156
      %v1160 = vclz %v1159
      %v1161 = vsub.s32 %v1160, 2
      %vm1162 = vcmp.gt.s32.totalorder 0, %v1161
      %v1163 = vsel %vm1162, 0, %v1161
      %v1164 = vsub.s32 32, %v1163
      %v1165 = vshll.u32 %v1156, %v1163
      %v1166 = vshrl.u32 %v1148, %v1164
      %v1167 = vor.u32 %v1165, %v1166
      %v1168 = vsub.s32 4294967266, %v1163
      %v1169 = vadd.s32 %v1168, 127
      %v1170 = vshll.u32 %v1169, 23
      %v1171 = vor.u32 4788187, %v1170
      %v1172 = vand.u32 2147483647, %v1171
      %v1174 = vcvt.s32.f32 %v1167
      %v1175 = vmul.f32 %v1174, %v1172
      %v1176 = vxor.u32 %v1175, 2147483648
      %v1177 = vsel %vm1094, %v1176, %v1175
      %v1178 = vsub.s32 4, %v1154
      %v1179 = vsel %vm1094, %v1178, %v1154
      %v1180 = vsel %vm1093, %v981, %v1177
      %v1181 = vsel %vm1093, 0, %v1179
      %v1182 = vcosq.f32.pop %v1180
      %v1183 = vsinq.f32.pop %v1180
      %vm1184 = vweird.f32 %v981
      %v1185 = vand.u32 %v1181, 3
      %vm1186 = vcmp.lt.s32.totalorder %v1185, 2
      %vm1187 = vcmp.eq.s32.totalorder %v1185, 0
      %v1188 = vxor.u32 %v1183, 2147483648
      %v1189 = vsel %vm1187, %v1182, %v1188
      %vm1190 = vcmp.eq.s32.totalorder %v1185, 2
      %v1191 = vxor.u32 %v1182, 2147483648
      %v1192 = vsel %vm1190, %v1191, %v1183
      %v1193 = vsel %vm1186, %v1189, %v1192
      %v1194 = vsel %vm1184, nan, %v1193
      %1196 = vrot.lane.b32.xlu0 %v1194, 42
      %v1197 = vpop.permute.xlu0 %1196
      %vm1199 = vcmask 386384
      %1200 = vst.msk [vmem:[#allocation2] sm:$0x3] %vm1199, %v1197
      %v1201 = vld [vmem:[#allocation2] sm:$0x3]
      %v1202 = vld [vmem:[%s2] sm:$0xff]
      %v1203 = vld [vmem:[%s2 + $0x8] sm:$0xff]
      %v1204 = vld [vmem:[%s2 + $0x10] sm:$0xff]
      %v1205 = vld [vmem:[%s2 + $0x18] sm:$0xff]
      %v1206 = vld [vmem:[%s2 + $0x20] sm:$0xff]
      %v1207 = vld [vmem:[%s2 + $0x28] sm:$0xff]
      %v1208 = vpack.c.bf16 %v1201, %v1201
      %v1209 = vpack.c.bf16 %v1203, %v1202
      %v1210 = vpack.c.bf16 %v1205, %v1204
      %v1211 = vpack.c.bf16 %v1207, %v1206
      %vm1212 = vcmask 392192
      %v1214 = vsel %vm1212, %v1208, 0
      %1216 = vmatprep.subr.bf16.mxu0 0
      %1217 = vmatpush1.bf16.msra.mxu0 0
      %1218 = vmatprep.subr.bf16.mxu0 0
      %1219 = vmatpush1.bf16.msra.mxu0 0
      %1220 = vmatprep.subr.bf16.mxu0 0
      %1221 = vmatpush1.bf16.msra.mxu0 0
      %1222 = vmatprep.subr.bf16.mxu0 0
      %1223 = vmatpush1.bf16.msra.mxu0 0
      %1224 = vmatprep.subr.bf16.mxu0 0
      %1225 = vmatpush1.bf16.msra.mxu0 0
      %1226 = vmatprep.subr.bf16.mxu0 0
      %1227 = vmatpush1.bf16.msra.mxu0 %v1211
      %1228 = vmatprep.subr.bf16.mxu0 0
      %1229 = vmatpush1.bf16.msra.mxu0 %v1210
      %1230 = vmatprep.subr.bf16.mxu0 0
      %1231 = vmatpush1.bf16.msra.mxu0 %v1209
      %1232 = vmatprep.subr.bf16.mxu0 0
      %1233 = vmatpush2.bf16.msra.mxu0 0
      %1234 = vmatprep.subr.bf16.mxu0 0
      %1235 = vmatpush2.bf16.msra.mxu0 0
      %1236 = vmatprep.subr.bf16.mxu0 0
      %1237 = vmatpush2.bf16.msra.mxu0 0
      %1238 = vmatprep.subr.bf16.mxu0 0
      %1239 = vmatpush2.bf16.msra.mxu0 0
      %1240 = vmatprep.subr.bf16.mxu0 0
      %1241 = vmatpush2.bf16.msra.mxu0 0
      %1242 = vmatprep.subr.bf16.mxu0 0
      %1243 = vmatpush2.bf16.msra.mxu0 0
      %1244 = vmatprep.subr.bf16.mxu0 0
      %1245 = vmatpush2.bf16.msra.mxu0 0
      %1246 = vmatprep.subr.bf16.mxu0 0
      %1247 = vmatpush2.bf16.msra.mxu0 0
      %1248 = vmatprep.mubr.bf16.mxu0 0
      %1249 = vmatmul.mubr.bf16.gmra.mxu0 %v1214
      %v1250 = vpop.f32.mrf.mxu0
      %v1251 = vadd.f32 0.0, %v1250
      %v1252 = vpop.f32.mrf.mxu0
      %v1253 = vpop.f32.mrf.mxu0
      %v1254 = vpop.f32.mrf.mxu0
      %1255 = vdwg.mxu0
      %vm1256 = vcmask 517120
      %v1257 = vsel %vm1256, %v1251, 0.0
      %v1258 = vrot.slane %v1257, 4
      %v1259 = vadd.f32 %v1257, %v1258
      %v1260 = vrot.slane %v1259, 2
      %v1261 = vadd.f32 %v1259, %v1260
      %v1262 = vrot.slane %v1261, 1
      %v1263 = vadd.f32 %v1261, %v1262
      %v1264 = vrcp.pop 2.0
      %v1265 = vmul.f32 %v1263, %v1264
      %v1266 = vsub.f32 %v1251, %v1265
      %v1267 = vmul.f32 %v1266, %v1266
      %v1268 = vsel %vm1256, %v1267, 0.0
      %v1269 = vrot.slane %v1268, 4
      %v1270 = vadd.f32 %v1268, %v1269
      %v1271 = vrot.slane %v1270, 2
      %v1272 = vadd.f32 %v1270, %v1271
      %v1273 = vrot.slane %v1272, 1
      %v1274 = vadd.f32 %v1272, %v1273
      %v1275 = vmul.f32 %v1274, %v1264
      %v1276 = vadd.f32 %v1275, 1e-05
      %v1277 = vrsqrt.pop %v1276
      %v1278 = vmul.f32 %v1266, %v1277
      %v1279 = vmax.f32 %v1278, 0.0
      %v1280 = vld [vmem:[%s3] sm:$0xff]
      %v1281 = vld [vmem:[%s3 + $0x8] sm:$0xff]
      %v1282 = vld [vmem:[%s3 + $0x10] sm:$0xff]
      %v1283 = vld [vmem:[%s3 + $0x18] sm:$0xff]
      %v1284 = vld [vmem:[%s3 + $0x20] sm:$0xff]
      %v1285 = vld [vmem:[%s3 + $0x28] sm:$0xff]
      %v1286 = vld [vmem:[%s3 + $0x30] sm:$0xff]
      %v1287 = vld [vmem:[%s3 + $0x38] sm:$0xff]
      %v1288 = vpack.c.bf16 %v1279, %v1279
      %v1289 = vpack.c.bf16 %v1281, %v1280
      %v1290 = vpack.c.bf16 %v1283, %v1282
      %v1291 = vpack.c.bf16 %v1285, %v1284
      %v1292 = vpack.c.bf16 %v1287, %v1286
      %vm1293 = vcmask 523264
      %v1295 = vsel %vm1293, %v1288, 0
      %1297 = vmatprep.subr.bf16.mxu0 0
      %1298 = vmatpush1.bf16.msra.mxu0 0
      %1299 = vmatprep.subr.bf16.mxu0 0
      %1300 = vmatpush1.bf16.msra.mxu0 0
      %1301 = vmatprep.subr.bf16.mxu0 0
      %1302 = vmatpush1.bf16.msra.mxu0 0
      %1303 = vmatprep.subr.bf16.mxu0 0
      %1304 = vmatpush1.bf16.msra.mxu0 0
      %1305 = vmatprep.subr.bf16.mxu0 0
      %1306 = vmatpush1.bf16.msra.mxu0 %v1292
      %1307 = vmatprep.subr.bf16.mxu0 0
      %1308 = vmatpush1.bf16.msra.mxu0 %v1291
      %1309 = vmatprep.subr.bf16.mxu0 0
      %1310 = vmatpush1.bf16.msra.mxu0 %v1290
      %1311 = vmatprep.subr.bf16.mxu0 0
      %1312 = vmatpush1.bf16.msra.mxu0 %v1289
      %1313 = vmatprep.subr.bf16.mxu0 0
      %1314 = vmatpush2.bf16.msra.mxu0 0
      %1315 = vmatprep.subr.bf16.mxu0 0
      %1316 = vmatpush2.bf16.msra.mxu0 0
      %1317 = vmatprep.subr.bf16.mxu0 0
      %1318 = vmatpush2.bf16.msra.mxu0 0
      %1319 = vmatprep.subr.bf16.mxu0 0
      %1320 = vmatpush2.bf16.msra.mxu0 0
      %1321 = vmatprep.subr.bf16.mxu0 0
      %1322 = vmatpush2.bf16.msra.mxu0 0
      %1323 = vmatprep.subr.bf16.mxu0 0
      %1324 = vmatpush2.bf16.msra.mxu0 0
      %1325 = vmatprep.subr.bf16.mxu0 0
      %1326 = vmatpush2.bf16.msra.mxu0 0
      %1327 = vmatprep.subr.bf16.mxu0 0
      %1328 = vmatpush2.bf16.msra.mxu0 0
      %1329 = vmatprep.mubr.bf16.mxu0 0
      %1330 = vmatmul.mubr.bf16.gmra.mxu0 %v1295
      %v1331 = vpop.f32.mrf.mxu0
      %v1332 = vadd.f32 0.0, %v1331
      %v1333 = vpop.f32.mrf.mxu0
      %v1334 = vpop.f32.mrf.mxu0
      %v1335 = vpop.f32.mrf.mxu0
      %1336 = vdwg.mxu0
      %v1337 = vsel %vm1256, %v1332, 0.0
      %v1338 = vrot.slane %v1337, 4
      %v1339 = vadd.f32 %v1337, %v1338
      %v1340 = vrot.slane %v1339, 2
      %v1341 = vadd.f32 %v1339, %v1340
      %v1342 = vrot.slane %v1341, 1
      %v1343 = vadd.f32 %v1341, %v1342
      %v1344 = vmul.f32 %v1343, %v1264
      %v1345 = vsub.f32 %v1332, %v1344
      %v1346 = vmul.f32 %v1345, %v1345
      %v1347 = vsel %vm1256, %v1346, 0.0
      %v1348 = vrot.slane %v1347, 4
      %v1349 = vadd.f32 %v1347, %v1348
      %v1350 = vrot.slane %v1349, 2
      %v1351 = vadd.f32 %v1349, %v1350
      %v1352 = vrot.slane %v1351, 1
      %v1353 = vadd.f32 %v1351, %v1352
      %v1354 = vmul.f32 %v1353, %v1264
      %v1355 = vadd.f32 %v1354, 1e-05
      %v1356 = vrsqrt.pop %v1355
      %v1357 = vmul.f32 %v1345, %v1356
      %v1358 = vmax.f32 %v1357, 0.0
      %v1359 = vld [vmem:[%s4] sm:$0xff]
      %v1360 = vld [vmem:[%s4 + $0x8] sm:$0xff]
      %v1361 = vld [vmem:[%s4 + $0x10] sm:$0xff]
      %v1362 = vld [vmem:[%s4 + $0x18] sm:$0xff]
      %v1363 = vld [vmem:[%s4 + $0x20] sm:$0xff]
      %v1364 = vld [vmem:[%s4 + $0x28] sm:$0xff]
      %v1365 = vld [vmem:[%s4 + $0x30] sm:$0xff]
      %v1366 = vld [vmem:[%s4 + $0x38] sm:$0xff]
      %v1367 = vpack.c.bf16 %v1358, %v1358
      %v1368 = vpack.c.bf16 %v1360, %v1359
      %v1369 = vpack.c.bf16 %v1362, %v1361
      %v1370 = vpack.c.bf16 %v1364, %v1363
      %v1371 = vpack.c.bf16 %v1366, %v1365
      %v1373 = vsel %vm1293, %v1367, 0
      %1375 = vmatprep.subr.bf16.mxu0 0
      %1376 = vmatpush1.bf16.msra.mxu0 0
      %1377 = vmatprep.subr.bf16.mxu0 0
      %1378 = vmatpush1.bf16.msra.mxu0 0
      %1379 = vmatprep.subr.bf16.mxu0 0
      %1380 = vmatpush1.bf16.msra.mxu0 0
      %1381 = vmatprep.subr.bf16.mxu0 0
      %1382 = vmatpush1.bf16.msra.mxu0 0
      %1383 = vmatprep.subr.bf16.mxu0 0
      %1384 = vmatpush1.bf16.msra.mxu0 %v1371
      %1385 = vmatprep.subr.bf16.mxu0 0
      %1386 = vmatpush1.bf16.msra.mxu0 %v1370
      %1387 = vmatprep.subr.bf16.mxu0 0
      %1388 = vmatpush1.bf16.msra.mxu0 %v1369
      %1389 = vmatprep.subr.bf16.mxu0 0
      %1390 = vmatpush1.bf16.msra.mxu0 %v1368
      %1391 = vmatprep.subr.bf16.mxu0 0
      %1392 = vmatpush2.bf16.msra.mxu0 0
      %1393 = vmatprep.subr.bf16.mxu0 0
      %1394 = vmatpush2.bf16.msra.mxu0 0
      %1395 = vmatprep.subr.bf16.mxu0 0
      %1396 = vmatpush2.bf16.msra.mxu0 0
      %1397 = vmatprep.subr.bf16.mxu0 0
      %1398 = vmatpush2.bf16.msra.mxu0 0
      %1399 = vmatprep.subr.bf16.mxu0 0
      %1400 = vmatpush2.bf16.msra.mxu0 0
      %1401 = vmatprep.subr.bf16.mxu0 0
      %1402 = vmatpush2.bf16.msra.mxu0 0
      %1403 = vmatprep.subr.bf16.mxu0 0
      %1404 = vmatpush2.bf16.msra.mxu0 0
      %1405 = vmatprep.subr.bf16.mxu0 0
      %1406 = vmatpush2.bf16.msra.mxu0 0
      %1407 = vmatprep.mubr.bf16.mxu0 0
      %1408 = vmatmul.mubr.bf16.gmra.mxu0 %v1373
      %v1409 = vpop.f32.mrf.mxu0
      %v1410 = vadd.f32 0.0, %v1409
      %v1411 = vpop.f32.mrf.mxu0
      %v1412 = vpop.f32.mrf.mxu0
      %v1413 = vpop.f32.mrf.mxu0
      %1414 = vdwg.mxu0
      %vm1415 = vcmask 254976
      %v1416 = vsel %vm1415, %v1410, 0.0
      %v1417 = vrot.slane %v1416, 4
      %v1418 = vadd.f32 %v1416, %v1417
      %v1419 = vrot.slane %v1418, 2
      %v1420 = vadd.f32 %v1418, %v1419
      %v1421 = vrot.slane %v1420, 1
      %v1422 = vadd.f32 %v1420, %v1421
      %v1423 = vmul.f32 %v1422, %v1264
      %v1424 = vsub.f32 %v1410, %v1423
      %v1425 = vmul.f32 %v1424, %v1424
      %v1426 = vsel %vm1415, %v1425, 0.0
      %v1427 = vrot.slane %v1426, 4
      %v1428 = vadd.f32 %v1426, %v1427
      %v1429 = vrot.slane %v1428, 2
      %v1430 = vadd.f32 %v1428, %v1429
      %v1431 = vrot.slane %v1430, 1
      %v1432 = vadd.f32 %v1430, %v1431
      %v1433 = vmul.f32 %v1432, %v1264
      %v1434 = vadd.f32 %v1433, 1e-05
      %v1435 = vrsqrt.pop %v1434
      %v1436 = vmul.f32 %v1424, %v1435
      %v1437 = vld [vmem:[%s289] sm:$0xff]
      %v1438 = vld [vmem:[%s289 + $0x8] sm:$0xff]
      %v1439 = vld [vmem:[%s5] sm:$0xff]
      %v1440 = vld [vmem:[%s5 + $0x8] sm:$0xff]
      %v1441 = vld [vmem:[%s5 + $0x10] sm:$0xff]
      %v1442 = vld [vmem:[%s5 + $0x18] sm:$0xff]
      %v1443 = vld [vmem:[%s5 + $0x20] sm:$0xff]
      %v1444 = vld [vmem:[%s5 + $0x28] sm:$0xff]
      %v1445 = vld [vmem:[%s5 + $0x30] sm:$0xff]
      %v1446 = vld [vmem:[%s5 + $0x38] sm:$0xff]
      %v1447 = vld [vmem:[%s5 + $0x40] sm:$0xff]
      %v1448 = vld [vmem:[%s5 + $0x48] sm:$0xff]
      %v1449 = vld [vmem:[%s5 + $0x50] sm:$0xff]
      %v1450 = vld [vmem:[%s5 + $0x58] sm:$0xff]
      %v1451 = vld [vmem:[%s5 + $0x60] sm:$0xff]
      %v1452 = vld [vmem:[%s5 + $0x68] sm:$0xff]
      %v1453 = vld [vmem:[%s5 + $0x70] sm:$0xff]
      %v1454 = vld [vmem:[%s5 + $0x78] sm:$0xff]
      %v1455 = vld [vmem:[%s5 + $0x80] sm:$0xff]
      %v1456 = vld [vmem:[%s5 + $0x88] sm:$0xff]
      %v1457 = vld [vmem:[%s5 + $0x90] sm:$0xff]
      %v1458 = vld [vmem:[%s5 + $0x98] sm:$0xff]
      %v1459 = vld [vmem:[%s5 + $0xa0] sm:$0xff]
      %v1460 = vld [vmem:[%s5 + $0xa8] sm:$0xff]
      %v1461 = vld [vmem:[%s5 + $0xb0] sm:$0xff]
      %v1462 = vld [vmem:[%s5 + $0xb8] sm:$0xff]
      %v1463 = vld [vmem:[%s5 + $0xc0] sm:$0xff]
      %v1464 = vld [vmem:[%s5 + $0xc8] sm:$0xff]
      %v1465 = vld [vmem:[%s5 + $0xd0] sm:$0xff]
      %v1466 = vld [vmem:[%s5 + $0xd8] sm:$0xff]
      %v1467 = vld [vmem:[%s5 + $0xe0] sm:$0xff]
      %v1468 = vld [vmem:[%s5 + $0xe8] sm:$0xff]
      %v1469 = vld [vmem:[%s5 + $0xf0] sm:$0xff]
      %v1470 = vld [vmem:[%s5 + $0xf8] sm:$0xff]
      %v1471 = vld [vmem:[%s5 + $0x100] sm:$0xff]
      %v1472 = vld [vmem:[%s5 + $0x108] sm:$0xff]
      %v1473 = vld [vmem:[%s5 + $0x110] sm:$0xff]
      %v1474 = vld [vmem:[%s5 + $0x118] sm:$0xff]
      %v1475 = vld [vmem:[%s5 + $0x120] sm:$0xff]
      %v1476 = vld [vmem:[%s5 + $0x128] sm:$0xff]
      %v1477 = vld [vmem:[%s5 + $0x130] sm:$0xff]
      %v1478 = vld [vmem:[%s5 + $0x138] sm:$0xff]
      %v1479 = vld [vmem:[%s5 + $0x140] sm:$0xff]
      %v1480 = vld [vmem:[%s5 + $0x148] sm:$0xff]
      %v1481 = vld [vmem:[%s5 + $0x150] sm:$0xff]
      %v1482 = vld [vmem:[%s5 + $0x158] sm:$0xff]
      %v1483 = vld [vmem:[%s5 + $0x160] sm:$0xff]
      %v1484 = vld [vmem:[%s5 + $0x168] sm:$0xff]
      %v1485 = vld [vmem:[%s5 + $0x170] sm:$0xff]
      %v1486 = vld [vmem:[%s5 + $0x178] sm:$0xff]
      %v1487 = vld [vmem:[%s5 + $0x180] sm:$0xff]
      %v1488 = vld [vmem:[%s5 + $0x188] sm:$0xff]
      %v1489 = vld [vmem:[%s5 + $0x190] sm:$0xff]
      %v1490 = vld [vmem:[%s5 + $0x198] sm:$0xff]
      %v1491 = vld [vmem:[%s5 + $0x1a0] sm:$0xff]
      %v1492 = vld [vmem:[%s5 + $0x1a8] sm:$0xff]
      %v1493 = vld [vmem:[%s5 + $0x1b0] sm:$0xff]
      %v1494 = vld [vmem:[%s5 + $0x1b8] sm:$0xff]
      %v1495 = vld [vmem:[%s5 + $0x1c0] sm:$0xff]
      %v1496 = vld [vmem:[%s5 + $0x1c8] sm:$0xff]
      %v1497 = vld [vmem:[%s5 + $0x1d0] sm:$0xff]
      %v1498 = vld [vmem:[%s5 + $0x1d8] sm:$0xff]
      %v1499 = vld [vmem:[%s5 + $0x1e0] sm:$0xff]
      %v1500 = vld [vmem:[%s5 + $0x1e8] sm:$0xff]
      %v1501 = vld [vmem:[%s5 + $0x1f0] sm:$0xff]
      %v1502 = vld [vmem:[%s5 + $0x1f8] sm:$0xff]
      %v1503 = vld [vmem:[%s5 + $0x200] sm:$0xff]
      %v1504 = vld [vmem:[%s5 + $0x208] sm:$0xff]
      %v1505 = vld [vmem:[%s5 + $0x210] sm:$0xff]
      %v1506 = vld [vmem:[%s5 + $0x218] sm:$0xff]
      %v1507 = vld [vmem:[%s5 + $0x220] sm:$0xff]
      %v1508 = vld [vmem:[%s5 + $0x228] sm:$0xff]
      %v1509 = vld [vmem:[%s5 + $0x230] sm:$0xff]
      %v1510 = vld [vmem:[%s5 + $0x238] sm:$0xff]
      %v1511 = vld [vmem:[%s5 + $0x240] sm:$0xff]
      %v1512 = vld [vmem:[%s5 + $0x248] sm:$0xff]
      %v1513 = vld [vmem:[%s5 + $0x250] sm:$0xff]
      %v1514 = vld [vmem:[%s5 + $0x258] sm:$0xff]
      %v1515 = vld [vmem:[%s5 + $0x260] sm:$0xff]
      %v1516 = vld [vmem:[%s5 + $0x268] sm:$0xff]
      %v1517 = vld [vmem:[%s5 + $0x270] sm:$0xff]
      %v1518 = vld [vmem:[%s5 + $0x278] sm:$0xff]
      %v1519 = vld [vmem:[%s5 + $0x280] sm:$0xff]
      %v1520 = vld [vmem:[%s5 + $0x288] sm:$0xff]
      %v1521 = vld [vmem:[%s5 + $0x290] sm:$0xff]
      %v1522 = vld [vmem:[%s5 + $0x298] sm:$0xff]
      %v1523 = vld [vmem:[%s5 + $0x2a0] sm:$0xff]
      %v1524 = vld [vmem:[%s5 + $0x2a8] sm:$0xff]
      %v1525 = vld [vmem:[%s5 + $0x2b0] sm:$0xff]
      %v1526 = vld [vmem:[%s5 + $0x2b8] sm:$0xff]
      %v1527 = vld [vmem:[%s5 + $0x2c0] sm:$0xff]
      %v1528 = vld [vmem:[%s5 + $0x2c8] sm:$0xff]
      %v1529 = vld [vmem:[%s5 + $0x2d0] sm:$0xff]
      %v1530 = vld [vmem:[%s5 + $0x2d8] sm:$0xff]
      %v1531 = vld [vmem:[%s5 + $0x2e0] sm:$0xff]
      %v1532 = vld [vmem:[%s5 + $0x2e8] sm:$0xff]
      %v1533 = vld [vmem:[%s5 + $0x2f0] sm:$0xff]
      %v1534 = vld [vmem:[%s5 + $0x2f8] sm:$0xff]
      %v1535 = vld [vmem:[%s5 + $0x300] sm:$0xff]
      %v1536 = vld [vmem:[%s5 + $0x308] sm:$0xff]
      %v1537 = vld [vmem:[%s5 + $0x310] sm:$0xff]
      %v1538 = vld [vmem:[%s5 + $0x318] sm:$0xff]
      %v1539 = vld [vmem:[%s5 + $0x320] sm:$0xff]
      %v1540 = vld [vmem:[%s5 + $0x328] sm:$0xff]
      %v1541 = vld [vmem:[%s5 + $0x330] sm:$0xff]
      %v1542 = vld [vmem:[%s5 + $0x338] sm:$0xff]
      %v1543 = vld [vmem:[%s5 + $0x340] sm:$0xff]
      %v1544 = vld [vmem:[%s5 + $0x348] sm:$0xff]
      %v1545 = vld [vmem:[%s5 + $0x350] sm:$0xff]
      %v1546 = vld [vmem:[%s5 + $0x358] sm:$0xff]
      %v1547 = vld [vmem:[%s5 + $0x360] sm:$0xff]
      %v1548 = vld [vmem:[%s5 + $0x368] sm:$0xff]
      %v1549 = vld [vmem:[%s5 + $0x370] sm:$0xff]
      %v1550 = vld [vmem:[%s5 + $0x378] sm:$0xff]
      %v1551 = vld [vmem:[%s5 + $0x380] sm:$0xff]
      %v1552 = vld [vmem:[%s5 + $0x388] sm:$0xff]
      %v1553 = vld [vmem:[%s5 + $0x390] sm:$0xff]
      %v1554 = vld [vmem:[%s5 + $0x398] sm:$0xff]
      %v1555 = vld [vmem:[%s5 + $0x3a0] sm:$0xff]
      %v1556 = vld [vmem:[%s5 + $0x3a8] sm:$0xff]
      %v1557 = vld [vmem:[%s5 + $0x3b0] sm:$0xff]
      %v1558 = vld [vmem:[%s5 + $0x3b8] sm:$0xff]
      %v1559 = vld [vmem:[%s5 + $0x3c0] sm:$0xff]
      %v1560 = vld [vmem:[%s5 + $0x3c8] sm:$0xff]
      %v1561 = vld [vmem:[%s5 + $0x3d0] sm:$0xff]
      %v1562 = vld [vmem:[%s5 + $0x3d8] sm:$0xff]
      %v1563 = vld [vmem:[%s5 + $0x3e0] sm:$0xff]
      %v1564 = vld [vmem:[%s5 + $0x3e8] sm:$0xff]
      %v1565 = vld [vmem:[%s5 + $0x3f0] sm:$0xff]
      %v1566 = vld [vmem:[%s5 + $0x3f8] sm:$0xff]
      %v1569 = vcombine.high %v1437, %v1437
      %v1571 = vunpack.c.l.s4 1983009808
      %v1572 = vunpack.c.0.s8 %v1571
      %v1573 = vlaneseq
      %v1574 = vshrl.u32 %v1573, 7
      %v1575 = vsub.s32 %v1572, %v1574
      %v1576 = vrot.slane %v1437, %v1575
      %v1578 = vunpack.c.l.s4 1983009808
      %v1579 = vunpack.c.0.s8 %v1578
      %v1580 = vlaneseq
      %v1581 = vshrl.u32 %v1580, 7
      %v1582 = vsub.s32 %v1579, %v1581
      %v1583 = vrot.slane %v1569, %v1582
      %v1584 = vcombine.high %v1576, %v1576
      %v1585 = vcombine.high %v1583, %v1583
      %v1586 = vcombine.high %v1438, %v1438
      %v1588 = vunpack.c.l.s4 1983009808
      %v1589 = vunpack.c.0.s8 %v1588
      %v1590 = vlaneseq
      %v1591 = vshrl.u32 %v1590, 7
      %v1592 = vsub.s32 %v1589, %v1591
      %v1593 = vrot.slane %v1438, %v1592
      %v1595 = vunpack.c.l.s4 1983009808
      %v1596 = vunpack.c.0.s8 %v1595
      %v1597 = vlaneseq
      %v1598 = vshrl.u32 %v1597, 7
      %v1599 = vsub.s32 %v1596, %v1598
      %v1600 = vrot.slane %v1586, %v1599
      %v1601 = vcombine.high %v1593, %v1593
      %v1602 = vcombine.high %v1600, %v1600
      %v1611 = vpack.c.bf16 %v1576, %v1576
      %v1612 = vpack.c.bf16 %v1584, %v1584
      %v1613 = vpack.c.bf16 %v1583, %v1583
      %v1614 = vpack.c.bf16 %v1585, %v1585
      %v1615 = vpack.c.bf16 %v1593, %v1593
      %v1616 = vpack.c.bf16 %v1601, %v1601
      %v1617 = vpack.c.bf16 %v1600, %v1600
      %v1618 = vpack.c.bf16 %v1602, %v1602
      %v1619 = vpack.c.bf16 %v1440, %v1439
      %v1620 = vpack.c.bf16 %v1442, %v1441
      %v1621 = vpack.c.bf16 %v1444, %v1443
      %v1622 = vpack.c.bf16 %v1446, %v1445
      %v1623 = vpack.c.bf16 %v1448, %v1447
      %v1624 = vpack.c.bf16 %v1450, %v1449
      %v1625 = vpack.c.bf16 %v1452, %v1451
      %v1626 = vpack.c.bf16 %v1454, %v1453
      %v1627 = vpack.c.bf16 %v1456, %v1455
      %v1628 = vpack.c.bf16 %v1458, %v1457
      %v1629 = vpack.c.bf16 %v1460, %v1459
      %v1630 = vpack.c.bf16 %v1462, %v1461
      %v1631 = vpack.c.bf16 %v1464, %v1463
      %v1632 = vpack.c.bf16 %v1466, %v1465
      %v1633 = vpack.c.bf16 %v1468, %v1467
      %v1634 = vpack.c.bf16 %v1470, %v1469
      %v1635 = vpack.c.bf16 %v1472, %v1471
      %v1636 = vpack.c.bf16 %v1474, %v1473
      %v1637 = vpack.c.bf16 %v1476, %v1475
      %v1638 = vpack.c.bf16 %v1478, %v1477
      %v1639 = vpack.c.bf16 %v1480, %v1479
      %v1640 = vpack.c.bf16 %v1482, %v1481
      %v1641 = vpack.c.bf16 %v1484, %v1483
      %v1642 = vpack.c.bf16 %v1486, %v1485
      %v1643 = vpack.c.bf16 %v1488, %v1487
      %v1644 = vpack.c.bf16 %v1490, %v1489
      %v1645 = vpack.c.bf16 %v1492, %v1491
      %v1646 = vpack.c.bf16 %v1494, %v1493
      %v1647 = vpack.c.bf16 %v1496, %v1495
      %v1648 = vpack.c.bf16 %v1498, %v1497
      %v1649 = vpack.c.bf16 %v1500, %v1499
      %v1650 = vpack.c.bf16 %v1502, %v1501
      %v1651 = vpack.c.bf16 %v1504, %v1503
      %v1652 = vpack.c.bf16 %v1506, %v1505
      %v1653 = vpack.c.bf16 %v1508, %v1507
      %v1654 = vpack.c.bf16 %v1510, %v1509
      %v1655 = vpack.c.bf16 %v1512, %v1511
      %v1656 = vpack.c.bf16 %v1514, %v1513
      %v1657 = vpack.c.bf16 %v1516, %v1515
      %v1658 = vpack.c.bf16 %v1518, %v1517
      %v1659 = vpack.c.bf16 %v1520, %v1519
      %v1660 = vpack.c.bf16 %v1522, %v1521
      %v1661 = vpack.c.bf16 %v1524, %v1523
      %v1662 = vpack.c.bf16 %v1526, %v1525
      %v1663 = vpack.c.bf16 %v1528, %v1527
      %v1664 = vpack.c.bf16 %v1530, %v1529
      %v1665 = vpack.c.bf16 %v1532, %v1531
      %v1666 = vpack.c.bf16 %v1534, %v1533
      %v1667 = vpack.c.bf16 %v1536, %v1535
      %v1668 = vpack.c.bf16 %v1538, %v1537
      %v1669 = vpack.c.bf16 %v1540, %v1539
      %v1670 = vpack.c.bf16 %v1542, %v1541
      %v1671 = vpack.c.bf16 %v1544, %v1543
      %v1672 = vpack.c.bf16 %v1546, %v1545
      %v1673 = vpack.c.bf16 %v1548, %v1547
      %v1674 = vpack.c.bf16 %v1550, %v1549
      %v1675 = vpack.c.bf16 %v1552, %v1551
      %v1676 = vpack.c.bf16 %v1554, %v1553
      %v1677 = vpack.c.bf16 %v1556, %v1555
      %v1678 = vpack.c.bf16 %v1558, %v1557
      %v1679 = vpack.c.bf16 %v1560, %v1559
      %v1680 = vpack.c.bf16 %v1562, %v1561
      %v1681 = vpack.c.bf16 %v1564, %v1563
      %v1682 = vpack.c.bf16 %v1566, %v1565
      %1683 = vmatprep.subr.bf16.mxu0 0
      %1684 = vmatpush1.bf16.msra.mxu0 %v1626
      %1685 = vmatprep.subr.bf16.mxu0 0
      %1686 = vmatpush1.bf16.msra.mxu0 %v1625
      %1687 = vmatprep.subr.bf16.mxu0 0
      %1688 = vmatpush1.bf16.msra.mxu0 %v1624
      %1689 = vmatprep.subr.bf16.mxu0 0
      %1690 = vmatpush1.bf16.msra.mxu0 %v1623
      %1691 = vmatprep.subr.bf16.mxu0 0
      %1692 = vmatpush1.bf16.msra.mxu0 %v1622
      %1693 = vmatprep.subr.bf16.mxu0 0
      %1694 = vmatpush1.bf16.msra.mxu0 %v1621
      %1695 = vmatprep.subr.bf16.mxu0 0
      %1696 = vmatpush1.bf16.msra.mxu0 %v1620
      %1697 = vmatprep.subr.bf16.mxu0 0
      %1698 = vmatpush1.bf16.msra.mxu0 %v1619
      %1699 = vmatprep.subr.bf16.mxu0 0
      %1700 = vmatpush2.bf16.msra.mxu0 %v1634
      %1701 = vmatprep.subr.bf16.mxu0 0
      %1702 = vmatpush2.bf16.msra.mxu0 %v1633
      %1703 = vmatprep.subr.bf16.mxu0 0
      %1704 = vmatpush2.bf16.msra.mxu0 %v1632
      %1705 = vmatprep.subr.bf16.mxu0 0
      %1706 = vmatpush2.bf16.msra.mxu0 %v1631
      %1707 = vmatprep.subr.bf16.mxu0 0
      %1708 = vmatpush2.bf16.msra.mxu0 %v1630
      %1709 = vmatprep.subr.bf16.mxu0 0
      %1710 = vmatpush2.bf16.msra.mxu0 %v1629
      %1711 = vmatprep.subr.bf16.mxu0 0
      %1712 = vmatpush2.bf16.msra.mxu0 %v1628
      %1713 = vmatprep.subr.bf16.mxu0 0
      %1714 = vmatpush2.bf16.msra.mxu0 %v1627
      %1715 = vmatprep.mubr.bf16.mxu0 %v1612
      %1716 = vmatmul.mubr.bf16.gmra.mxu0 %v1611
      %v1717 = vpop.f32.mrf.mxu0
      %v1718 = vadd.f32 0.0, %v1717
      %v1719 = vpop.f32.mrf.mxu0
      %v1720 = vpop.f32.mrf.mxu0
      %v1721 = vpop.f32.mrf.mxu0
      %1722 = vdwg.mxu0
      %1723 = vmatprep.subr.bf16.mxu0 0
      %1724 = vmatpush1.bf16.msra.mxu0 %v1642
      %1725 = vmatprep.subr.bf16.mxu0 0
      %1726 = vmatpush1.bf16.msra.mxu0 %v1641
      %1727 = vmatprep.subr.bf16.mxu0 0
      %1728 = vmatpush1.bf16.msra.mxu0 %v1640
      %1729 = vmatprep.subr.bf16.mxu0 0
      %1730 = vmatpush1.bf16.msra.mxu0 %v1639
      %1731 = vmatprep.subr.bf16.mxu0 0
      %1732 = vmatpush1.bf16.msra.mxu0 %v1638
      %1733 = vmatprep.subr.bf16.mxu0 0
      %1734 = vmatpush1.bf16.msra.mxu0 %v1637
      %1735 = vmatprep.subr.bf16.mxu0 0
      %1736 = vmatpush1.bf16.msra.mxu0 %v1636
      %1737 = vmatprep.subr.bf16.mxu0 0
      %1738 = vmatpush1.bf16.msra.mxu0 %v1635
      %1739 = vmatprep.subr.bf16.mxu0 0
      %1740 = vmatpush2.bf16.msra.mxu0 %v1650
      %1741 = vmatprep.subr.bf16.mxu0 0
      %1742 = vmatpush2.bf16.msra.mxu0 %v1649
      %1743 = vmatprep.subr.bf16.mxu0 0
      %1744 = vmatpush2.bf16.msra.mxu0 %v1648
      %1745 = vmatprep.subr.bf16.mxu0 0
      %1746 = vmatpush2.bf16.msra.mxu0 %v1647
      %1747 = vmatprep.subr.bf16.mxu0 0
      %1748 = vmatpush2.bf16.msra.mxu0 %v1646
      %1749 = vmatprep.subr.bf16.mxu0 0
      %1750 = vmatpush2.bf16.msra.mxu0 %v1645
      %1751 = vmatprep.subr.bf16.mxu0 0
      %1752 = vmatpush2.bf16.msra.mxu0 %v1644
      %1753 = vmatprep.subr.bf16.mxu0 0
      %1754 = vmatpush2.bf16.msra.mxu0 %v1643
      %1755 = vmatprep.mubr.bf16.mxu0 %v1614
      %1756 = vmatmul.mubr.bf16.gmra.mxu0 %v1613
      %v1757 = vpop.f32.mrf.mxu0
      %v1758 = vadd.f32 %v1718, %v1757
      %v1759 = vpop.f32.mrf.mxu0
      %v1760 = vpop.f32.mrf.mxu0
      %v1761 = vpop.f32.mrf.mxu0
      %1762 = vdwg.mxu0
      %1763 = vmatprep.subr.bf16.mxu0 0
      %1764 = vmatpush1.bf16.msra.mxu0 %v1658
      %1765 = vmatprep.subr.bf16.mxu0 0
      %1766 = vmatpush1.bf16.msra.mxu0 %v1657
      %1767 = vmatprep.subr.bf16.mxu0 0
      %1768 = vmatpush1.bf16.msra.mxu0 %v1656
      %1769 = vmatprep.subr.bf16.mxu0 0
      %1770 = vmatpush1.bf16.msra.mxu0 %v1655
      %1771 = vmatprep.subr.bf16.mxu0 0
      %1772 = vmatpush1.bf16.msra.mxu0 %v1654
      %1773 = vmatprep.subr.bf16.mxu0 0
      %1774 = vmatpush1.bf16.msra.mxu0 %v1653
      %1775 = vmatprep.subr.bf16.mxu0 0
      %1776 = vmatpush1.bf16.msra.mxu0 %v1652
      %1777 = vmatprep.subr.bf16.mxu0 0
      %1778 = vmatpush1.bf16.msra.mxu0 %v1651
      %1779 = vmatprep.subr.bf16.mxu0 0
      %1780 = vmatpush2.bf16.msra.mxu0 %v1666
      %1781 = vmatprep.subr.bf16.mxu0 0
      %1782 = vmatpush2.bf16.msra.mxu0 %v1665
      %1783 = vmatprep.subr.bf16.mxu0 0
      %1784 = vmatpush2.bf16.msra.mxu0 %v1664
      %1785 = vmatprep.subr.bf16.mxu0 0
      %1786 = vmatpush2.bf16.msra.mxu0 %v1663
      %1787 = vmatprep.subr.bf16.mxu0 0
      %1788 = vmatpush2.bf16.msra.mxu0 %v1662
      %1789 = vmatprep.subr.bf16.mxu0 0
      %1790 = vmatpush2.bf16.msra.mxu0 %v1661
      %1791 = vmatprep.subr.bf16.mxu0 0
      %1792 = vmatpush2.bf16.msra.mxu0 %v1660
      %1793 = vmatprep.subr.bf16.mxu0 0
      %1794 = vmatpush2.bf16.msra.mxu0 %v1659
      %1795 = vmatprep.mubr.bf16.mxu0 %v1616
      %1796 = vmatmul.mubr.bf16.gmra.mxu0 %v1615
      %v1797 = vpop.f32.mrf.mxu0
      %v1798 = vadd.f32 %v1758, %v1797
      %v1799 = vpop.f32.mrf.mxu0
      %v1800 = vpop.f32.mrf.mxu0
      %v1801 = vpop.f32.mrf.mxu0
      %1802 = vdwg.mxu0
      %1803 = vmatprep.subr.bf16.mxu0 0
      %1804 = vmatpush1.bf16.msra.mxu0 %v1674
      %1805 = vmatprep.subr.bf16.mxu0 0
      %1806 = vmatpush1.bf16.msra.mxu0 %v1673
      %1807 = vmatprep.subr.bf16.mxu0 0
      %1808 = vmatpush1.bf16.msra.mxu0 %v1672
      %1809 = vmatprep.subr.bf16.mxu0 0
      %1810 = vmatpush1.bf16.msra.mxu0 %v1671
      %1811 = vmatprep.subr.bf16.mxu0 0
      %1812 = vmatpush1.bf16.msra.mxu0 %v1670
      %1813 = vmatprep.subr.bf16.mxu0 0
      %1814 = vmatpush1.bf16.msra.mxu0 %v1669
      %1815 = vmatprep.subr.bf16.mxu0 0
      %1816 = vmatpush1.bf16.msra.mxu0 %v1668
      %1817 = vmatprep.subr.bf16.mxu0 0
      %1818 = vmatpush1.bf16.msra.mxu0 %v1667
      %1819 = vmatprep.subr.bf16.mxu0 0
      %1820 = vmatpush2.bf16.msra.mxu0 %v1682
      %1821 = vmatprep.subr.bf16.mxu0 0
      %1822 = vmatpush2.bf16.msra.mxu0 %v1681
      %1823 = vmatprep.subr.bf16.mxu0 0
      %1824 = vmatpush2.bf16.msra.mxu0 %v1680
      %1825 = vmatprep.subr.bf16.mxu0 0
      %1826 = vmatpush2.bf16.msra.mxu0 %v1679
      %1827 = vmatprep.subr.bf16.mxu0 0
      %1828 = vmatpush2.bf16.msra.mxu0 %v1678
      %1829 = vmatprep.subr.bf16.mxu0 0
      %1830 = vmatpush2.bf16.msra.mxu0 %v1677
      %1831 = vmatprep.subr.bf16.mxu0 0
      %1832 = vmatpush2.bf16.msra.mxu0 %v1676
      %1833 = vmatprep.subr.bf16.mxu0 0
      %1834 = vmatpush2.bf16.msra.mxu0 %v1675
      %1835 = vmatprep.mubr.bf16.mxu0 %v1618
      %1836 = vmatmul.mubr.bf16.gmra.mxu0 %v1617
      %v1837 = vpop.f32.mrf.mxu0
      %v1838 = vadd.f32 %v1798, %v1837
      %v1839 = vpop.f32.mrf.mxu0
      %v1840 = vpop.f32.mrf.mxu0
      %v1841 = vpop.f32.mrf.mxu0
      %1842 = vdwg.mxu0
      %v1843 = vld [vmem:[%s6] sm:$0xff]
      %v1844 = vld [vmem:[%s6 + $0x8] sm:$0xff]
      %v1845 = vld [vmem:[%s6 + $0x10] sm:$0xff]
      %v1846 = vld [vmem:[%s6 + $0x18] sm:$0xff]
      %v1847 = vpack.c.bf16 %v1436, %v1436
      %v1848 = vpack.c.bf16 %v1844, %v1843
      %v1849 = vpack.c.bf16 %v1846, %v1845
      %vm1850 = vcmask 261120
      %v1852 = vsel %vm1850, %v1847, 0
      %1854 = vmatprep.subr.bf16.mxu0 0
      %1855 = vmatpush1.bf16.msra.mxu0 0
      %1856 = vmatprep.subr.bf16.mxu0 0
      %1857 = vmatpush1.bf16.msra.mxu0 0
      %1858 = vmatprep.subr.bf16.mxu0 0
      %1859 = vmatpush1.bf16.msra.mxu0 0
      %1860 = vmatprep.subr.bf16.mxu0 0
      %1861 = vmatpush1.bf16.msra.mxu0 0
      %1862 = vmatprep.subr.bf16.mxu0 0
      %1863 = vmatpush1.bf16.msra.mxu0 0
      %1864 = vmatprep.subr.bf16.mxu0 0
      %1865 = vmatpush1.bf16.msra.mxu0 0
      %1866 = vmatprep.subr.bf16.mxu0 0
      %1867 = vmatpush1.bf16.msra.mxu0 %v1849
      %1868 = vmatprep.subr.bf16.mxu0 0
      %1869 = vmatpush1.bf16.msra.mxu0 %v1848
      %1870 = vmatprep.subr.bf16.mxu0 0
      %1871 = vmatpush2.bf16.msra.mxu0 0
      %1872 = vmatprep.subr.bf16.mxu0 0
      %1873 = vmatpush2.bf16.msra.mxu0 0
      %1874 = vmatprep.subr.bf16.mxu0 0
      %1875 = vmatpush2.bf16.msra.mxu0 0
      %1876 = vmatprep.subr.bf16.mxu0 0
      %1877 = vmatpush2.bf16.msra.mxu0 0
      %1878 = vmatprep.subr.bf16.mxu0 0
      %1879 = vmatpush2.bf16.msra.mxu0 0
      %1880 = vmatprep.subr.bf16.mxu0 0
      %1881 = vmatpush2.bf16.msra.mxu0 0
      %1882 = vmatprep.subr.bf16.mxu0 0
      %1883 = vmatpush2.bf16.msra.mxu0 0
      %1884 = vmatprep.subr.bf16.mxu0 0
      %1885 = vmatpush2.bf16.msra.mxu0 0
      %1886 = vmatprep.mubr.bf16.mxu0 0
      %1887 = vmatmul.mubr.bf16.gmra.mxu0 %v1852
      %v1888 = vpop.f32.mrf.mxu0
      %v1889 = vadd.f32 0.0, %v1888
      %v1890 = vpop.f32.mrf.mxu0
      %v1891 = vpop.f32.mrf.mxu0
      %v1892 = vpop.f32.mrf.mxu0
      %1893 = vdwg.mxu0
      %v1894 = vmul.f32 %v1838, %v1838
      %v1895 = vsel %vm1415, %v1894, 0.0
      %1896 = vadd.xlane.f32.xlu0 %v1895
      %v1897 = vpop.xlane.xlu0 %1896
      %v1898 = vrsqrt.pop %v1897
      %v1899 = vmul.f32 %v1897, %v1898
      %vm1900 = vcmp.eq.f32.partialorder %v1897, inf
      %v1901 = vsel %vm1900, %v1897, %v1899
      %vm1902 = vcmp.eq.f32.partialorder %v1897, 0.0
      %v1903 = vand.u32 %v1897, 2147483648
      %v1904 = vsel %vm1902, %v1903, %v1901
      %v1905 = vmax.f32 %v1904, 1e-12
      %v1906 = vrcp.pop %v1905
      %v1907 = vmul.f32 %v1838, %v1906
      %v1908 = vmul.f32 %v1889, %v1889
      %v1909 = vsel %vm1415, %v1908, 0.0
      %1910 = vadd.xlane.f32.xlu0 %v1909
      %v1911 = vpop.xlane.xlu0 %1910
      %v1912 = vrsqrt.pop %v1911
      %v1913 = vmul.f32 %v1911, %v1912
      %vm1914 = vcmp.eq.f32.partialorder %v1911, inf
      %v1915 = vsel %vm1914, %v1911, %v1913
      %vm1916 = vcmp.eq.f32.partialorder %v1911, 0.0
      %v1917 = vand.u32 %v1911, 2147483648
      %v1918 = vsel %vm1916, %v1917, %v1915
      %v1919 = vmax.f32 %v1918, 1e-12
      %v1920 = vrcp.pop %v1919
      %v1921 = vmul.f32 %v1889, %v1920
      %v1922 = vpack.c.bf16 %v1907, %v1907
      %v1923 = vpack.c.bf16 %v1921, %v1921
      %v1925 = vsel %vm1850, %v1922, 0
      %v1928 = vsel %vm1850, %v1923, 0
      %1930 = vmatprep.subr.bf16.mxu0 0
      %1931 = vmatpush1.bf16.xpose.msra.mxu0 0
      %1932 = vmatprep.subr.bf16.mxu0 0
      %1933 = vmatpush1.bf16.xpose.msra.mxu0 0
      %1934 = vmatprep.subr.bf16.mxu0 0
      %1935 = vmatpush1.bf16.xpose.msra.mxu0 0
      %1936 = vmatprep.subr.bf16.mxu0 0
      %1937 = vmatpush1.bf16.xpose.msra.mxu0 0
      %1938 = vmatprep.subr.bf16.mxu0 0
      %1939 = vmatpush1.bf16.xpose.msra.mxu0 0
      %1940 = vmatprep.subr.bf16.mxu0 0
      %1941 = vmatpush1.bf16.xpose.msra.mxu0 0
      %1942 = vmatprep.subr.bf16.mxu0 0
      %1943 = vmatpush1.bf16.xpose.msra.mxu0 0
      %1944 = vmatprep.subr.bf16.mxu0 0
      %1945 = vmatpush1.bf16.xpose.msra.mxu0 %v1928
      %1946 = vmatprep.subr.bf16.mxu0 0
      %1947 = vmatpush2.bf16.xpose.msra.mxu0 0
      %1948 = vmatprep.subr.bf16.mxu0 0
      %1949 = vmatpush2.bf16.xpose.msra.mxu0 0
      %1950 = vmatprep.subr.bf16.mxu0 0
      %1951 = vmatpush2.bf16.xpose.msra.mxu0 0
      %1952 = vmatprep.subr.bf16.mxu0 0
      %1953 = vmatpush2.bf16.xpose.msra.mxu0 0
      %1954 = vmatprep.subr.bf16.mxu0 0
      %1955 = vmatpush2.bf16.xpose.msra.mxu0 0
      %1956 = vmatprep.subr.bf16.mxu0 0
      %1957 = vmatpush2.bf16.xpose.msra.mxu0 0
      %1958 = vmatprep.subr.bf16.mxu0 0
      %1959 = vmatpush2.bf16.xpose.msra.mxu0 0
      %1960 = vmatprep.subr.bf16.mxu0 0
      %1961 = vmatpush2.bf16.xpose.msra.mxu0 0
      %1962 = vmatprep.mubr.bf16.mxu0 0
      %1963 = vmatmul.mubr.bf16.gmra.mxu0 %v1925
      %v1964 = vpop.f32.mrf.mxu0
      %v1965 = vadd.f32 0.0, %v1964
      %v1966 = vpop.f32.mrf.mxu0
      %v1967 = vpop.f32.mrf.mxu0
      %v1968 = vpop.f32.mrf.mxu0
      %1969 = vdwg.mxu0
      %v1970 = vmul.f32 %v1965, 14.285714
      %vm1971 = vcmask 9216
      %v1972 = vsel %vm1971, %v1970, -inf
      %1973 = vmax.xlane.f32.xlu0 %v1972
      %v1974 = vpop.xlane.xlu0 %1973
      %v1975 = vsub.f32 %v1970, %v1974
      %v1976 = vmul.f32 %v1975, 1.442695
      %v1977 = vpow.pop %v1976
      %v1978 = vsel %vm1971, %v1977, 0.0
      %1979 = vadd.xlane.f32.xlu0 %v1978
      %v1980 = vpop.xlane.xlu0 %1979
      %v1981 = vlog2.pop %v1980
      %v1982 = vmul.f32 %v1981, 0.6931472
      %v1983 = vadd.f32 %v1974, %v1982
      %v1984 = vlaneseq
      %v1985 = vshrl.u32 %v1984, 7
      %vm1986 = vcmp.eq.s32.totalorder %v1985, %v296
      %v1987 = vsel %vm1986, %v1970, 0.0
      %v1988 = vsel %vm1971, %v1987, 0.0
      %1989 = vadd.xlane.f32.xlu0 %v1988
      %v1990 = vpop.xlane.xlu0 %1989
      %v1991 = vsub.f32 %v1983, %v1990
      %vm1992 = vcmask 1041408
      %v1993 = vsel %vm1992, %v1991, 0.0
      %v1994 = vrot.slane %v1993, 4
      %v1995 = vadd.f32 %v1993, %v1994
      %v1996 = vrot.slane %v1995, 2
      %v1997 = vadd.f32 %v1995, %v1996
      %v1998 = vrot.slane %v1997, 1
      %v1999 = vadd.f32 %v1997, %v1998
      %v2000 = vmul.f32 %v1999, 0.5
      %2001 = vst [vmem:[%s293] sm:$0x3] 0.0
      %2002 = vst.msk [vmem:[%s293] sm:$0x3] %vm1415, %v1838
      %2004 = vrot.lane.b32.xlu0 %v1889, 32
      %v2005 = vpop.permute.xlu0 %2004
      %vm2007 = vcmask 517376
      %2008 = vst.msk [vmem:[%s293] sm:$0x3] %vm2007, %v2005
      %2010 = vrot.lane.b32.xlu0 %v1970, 64
      %v2011 = vpop.permute.xlu0 %2010
      %vm2013 = vcmask 534016
      %2014 = vst.msk [vmem:[%s293] sm:$0x3] %vm2013, %v2011
      %vm2015 = vcmask 542224
      %2016 = vst.msk [vmem:[%s293] sm:$0x3] %vm2015, %v2000
      %p2017 = scmp.lt.s32.totalorder %s18, 1
      %s2018 = scalar_select %p2017, %s18, 1
      %s2019 = smul.addr %s2018, 2
      %s2020 = scalar_lea.vmem %s7, %s2019
      // Predicated region
      $region49: #{kqcon_forward.1} parent=47 // pred_check
        %p2021 = pneg %p193
      $region50: #{kqcon_forward.1} parent=47 // pred_check_branch
        %2023 = sbr.rel (%p2021) target = $region52
      $region51: #{kqcon_forward.1} parent=47 // pred_region
        _
      $region52: #{kqcon_forward.1} parent=47 // pred_fallthru
        _
    $region48: #{kqcon_forward.1} parent=5 // pred_fallthru
      _
    %p2024 = scmp.le.s32.totalorder 2, %s13
    // Predicated region
    $region53: #{kqcon_forward.1} parent=5 // pred_check
      %p2025 = pneg %p2024
    $region54: #{kqcon_forward.1} parent=5 // pred_check_branch
      %2027 = sbr.rel (%p2025) target = $region56
    $region55: #{kqcon_forward.1} parent=5 // pred_region
      %s2028 = ssub.s32 %s13, 2
      // Predicated region
      $region57: #{kqcon_forward.1} parent=55 // pred_check
        %p2029 = pneg %p199
      $region58: #{kqcon_forward.1} parent=55 // pred_check_branch
        %2031 = sbr.rel (%p2029) target = $region60
      $region59: #{kqcon_forward.1} parent=55 // pred_region
        %p2032 = scmp.lt.s32.totalorder %s19, 1
        %s2033 = scalar_select %p2032, %s19, 1
        %s2034 = smul.addr %s2033, 2
        %s2035 = scalar_lea.vmem %s7, %s2034
      $region60: #{kqcon_forward.1} parent=55 // pred_fallthru
        _
    $region56: #{kqcon_forward.1} parent=5 // pred_fallthru
      _
  $region6: #{kqcon_forward.1} parent=0 // loop_footer
    %s17 = sadd.s32 1, %s13
  $region7: #{kqcon_forward.1} parent=0 // loop_footer_branch
    %12 = sbr.rel target = $region3
  $region8: #{kqcon_forward.1} parent=0 // loop_exit
    _

</llo_original>
